<compile_context>
chip_gen: v7x
topology: tpu7x:2x2x1
jax: 0.10.0
libtpu: 0.0.40
codegen_flags: <defaults>
</compile_context>

<pallas_src>
import jax
import jax.numpy as jnp
from jax import lax
from jax.experimental import pallas as pl
from jax.experimental.pallas import tpu as pltpu

# --- architecture constants (match the PyTorch module) ---
C1_OUT, K1, S1 = 16, 8, 4     # conv1: Conv2d(Cin, 16, kernel_size=8, stride=4)
C2_OUT, K2, S2 = 32, 4, 2     # conv2: Conv2d(16, 32, kernel_size=4, stride=2)


def conv2d_size_out(size, kernel_size, stride):
    return (size - (kernel_size - 1) - 1) // stride + 1


# ----------------------------- fused Pallas kernel ----------------------------- #

def _critic_fused_kernel(p1_ref, w1_ref, b1_ref, w2_ref, b2_ref,
                         wfc_ref, bfc_ref, wv_ref, bv_ref,
                         out_ref, a1_ref, g1_ref, h2_ref):
    """Whole CriticNetwork forward in one kernel invocation (4 GEMMs total).

    p1_ref : (K2*K2 * Ho2*Wo2 * B, Cin*K1*K1) conv1 im2col patches, rows ordered
             (conv2 offset t=(di,dj), oi, oj, b), columns (c, ki, kj).
    w1_ref : (Cin*K1*K1, 16)           b1_ref : (1, K2*K2*16)  (bias tiled per offset)
    w2_ref : (K2*K2*16, 32)            b2_ref : (1, 32)        (offsets concat along K)
    wfc_ref: (Ho2*Wo2*32, hidden)      bfc_ref: (1, hidden)    (NCHW-flatten permuted)
    wv_ref : (hidden, 1)               bv_ref : (1, 1)
    out_ref: (B, 1)
    a1_ref : (K2*K2*Ho2*Wo2*B, 16)   conv1 GEMM result (VMEM scratch)
    g1_ref : (Ho2*Wo2*B, K2*K2*16)   lane-dense conv2 LHS (VMEM scratch)
    h2_ref : (B, Ho2*Wo2*32)         lane-dense fc LHS (VMEM scratch)
    """
    batch = out_ref.shape[0]
    c1 = w1_ref.shape[1]                 # 16 conv1 channels
    n_off = w2_ref.shape[0] // c1        # K2*K2 conv2 kernel offsets
    c2 = w2_ref.shape[1]                 # 32 conv2 channels
    n_sp = wfc_ref.shape[0] // c2        # Ho2*Wo2 conv2 spatial positions
    rows2 = n_sp * batch                 # conv2-output rows, ordered (oi, oj, b)

    # ---- conv1: ONE GEMM over every (offset, oi, oj, b) patch row.
    a1_ref[...] = jnp.dot(p1_ref[...], w1_ref[...],
                          preferred_element_type=jnp.float32)

    # ---- relayout: contiguous row slab t -> lane block t, so the conv2 LHS is
    #      lane-dense (256 lanes) and conv2 becomes a single K=256 GEMM.
    for t in range(n_off):
        g1_ref[:, t * c1:(t + 1) * c1] = a1_ref[t * rows2:(t + 1) * rows2, :]

    # ---- conv1 bias + ReLU (on the lane-dense form), then conv2 as ONE GEMM.
    g1 = jnp.maximum(g1_ref[...] + b1_ref[...], 0.0)
    h2 = jnp.maximum(
        jnp.dot(g1, w2_ref[...], preferred_element_type=jnp.float32)
        + b2_ref[...], 0.0)                                 # (rows2, 32), rows (oi,oj,b)

    # ---- relayout: spatial block p -> lane block p, giving a (B, n_sp*32) fc LHS.
    for p in range(n_sp):
        h2_ref[:, p * c2:(p + 1) * c2] = h2[p * batch:(p + 1) * batch, :]

    # ---- fc (+bias, ReLU) and value head, each ONE GEMM; only (B,1) hits HBM.
    h3 = jnp.maximum(
        jnp.dot(h2_ref[...], wfc_ref[...], preferred_element_type=jnp.float32)
        + bfc_ref[...], 0.0)                                # (B, hidden)
    out_ref[...] = (jnp.dot(h3, wv_ref[...], preferred_element_type=jnp.float32)
                    + bv_ref[...]).astype(out_ref.dtype)


def _full_spec(shape):
    zeros = (0,) * len(shape)
    return pl.BlockSpec(shape, lambda: zeros)


def critic_fused_call(patches1, prep, batch):
    inputs = (patches1, prep["w1"], prep["b1"], prep["w2"], prep["b2"],
              prep["wfc"], prep["bfc"], prep["wv"], prep["bv"])
    c1 = prep["w1"].shape[1]
    n_off = prep["w2"].shape[0] // c1
    c2 = prep["w2"].shape[1]
    n_sp = prep["wfc"].shape[0] // c2
    rows2 = n_sp * batch
    return pl.pallas_call(
        _critic_fused_kernel,
        out_shape=jax.ShapeDtypeStruct((batch, 1), jnp.float32),
        in_specs=[_full_spec(a.shape) for a in inputs],
        out_specs=_full_spec((batch, 1)),
        scratch_shapes=(
            pltpu.VMEM((n_off * rows2, c1), jnp.float32),   # conv1 GEMM result
            pltpu.VMEM((rows2, n_off * c1), jnp.float32),   # lane-dense conv2 LHS
            pltpu.VMEM((batch, n_sp * c2), jnp.float32),    # lane-dense fc LHS
        ),
    )(*inputs)


# ------------------- JAX glue: static-slice im2col (outside kernel) ------------- #

def _conv1_patches_offset_major(x):
    """conv1 im2col with rows ordered (conv2 offset t=(di,dj), oi, oj, b).

    Columns are ordered (c, ki, kj), matching conv1_w.reshape(16, Cin*K1*K1).
    Built exclusively from static strided slices / stack / transpose — no
    advanced-index gather (perf-review item). Note: rows are duplicated 2.25x
    relative to the unique conv1 windows; deduplicating would need an in-kernel
    gather and is not worth it at these sizes.
    """
    B, C, H, W = x.shape
    Ho1 = conv2d_size_out(H, K1, S1)
    Wo1 = conv2d_size_out(W, K1, S1)
    Ho2 = conv2d_size_out(Ho1, K2, S2)
    Wo2 = conv2d_size_out(Wo1, K2, S2)

    # conv1 im2col -> (B, C*K1*K1, Ho1, Wo1), columns ordered (c, ki, kj)
    cols = []
    for ki in range(K1):
        for kj in range(K1):
            cols.append(x[:, :, ki:ki + S1 * Ho1:S1, kj:kj + S1 * Wo1:S1])
    p = jnp.stack(cols, axis=2).reshape(B, C * K1 * K1, Ho1, Wo1)

    # per conv2-kernel-offset slab via static strided slices
    slabs = []
    for di in range(K2):
        for dj in range(K2):
            slabs.append(p[:, :, di:di + S2 * Ho2:S2, dj:dj + S2 * Wo2:S2])
    g = jnp.stack(slabs, axis=0)                  # (K2*K2, B, CK, Ho2, Wo2)
    g = g.transpose(0, 3, 4, 1, 2)                # (t, oi, oj, b, CK)
    return g.reshape(K2 * K2 * Ho2 * Wo2 * B, C * K1 * K1)


# ------------------------------- CriticNetwork --------------------------------- #

def init_params(input_shape, hidden_dim=64, seed=0):
    Cin, H, W = input_shape
    h = conv2d_size_out(conv2d_size_out(H, K1, S1), K2, S2)
    w = conv2d_size_out(conv2d_size_out(W, K1, S1), K2, S2)
    feature_size = h * w * C2_OUT

    keys = jax.random.split(jax.random.PRNGKey(seed), 8)

    def uniform(key, shape, fan_in):
        bound = 1.0 / jnp.sqrt(jnp.float32(fan_in))
        return jax.random.uniform(key, shape, jnp.float32, -bound, bound)

    params = {
        "conv1_w": uniform(keys[0], (C1_OUT, Cin, K1, K1), Cin * K1 * K1),
        "conv1_b": uniform(keys[1], (C1_OUT,), Cin * K1 * K1),
        "conv2_w": uniform(keys[2], (C2_OUT, C1_OUT, K2, K2), C1_OUT * K2 * K2),
        "conv2_b": uniform(keys[3], (C2_OUT,), C1_OUT * K2 * K2),
        "fc_w":    uniform(keys[4], (hidden_dim, feature_size), feature_size),
        "fc_b":    uniform(keys[5], (hidden_dim,), feature_size),
        "value_w": uniform(keys[6], (1, hidden_dim), hidden_dim),
        "value_b": uniform(keys[7], (1,), hidden_dim),
    }
    return params, feature_size


def prepare_params(params, input_shape, hidden_dim):
    """One-time (outside jit) weight reshapes/permutations into kernel layout."""
    Cin, H, W = input_shape
    Ho2 = conv2d_size_out(conv2d_size_out(H, K1, S1), K2, S2)
    Wo2 = conv2d_size_out(conv2d_size_out(W, K1, S1), K2, S2)

    w1 = params["conv1_w"].reshape(C1_OUT, Cin * K1 * K1).T            # (Cin*K1*K1, 16)
    # conv1 bias tiled across the K2*K2 offset lane-blocks of the wide layout
    b1 = jnp.tile(params["conv1_b"].reshape(1, C1_OUT), (1, K2 * K2))  # (1, K2*K2*16)
    # conv2 weight: concatenate the K2*K2 offset blocks along K -> (K2*K2*16, 32)
    w2 = params["conv2_w"].transpose(2, 3, 1, 0).reshape(K2 * K2 * C1_OUT, C2_OUT)
    b2 = params["conv2_b"].reshape(1, C2_OUT)
    # fc weight: fold PyTorch's NCHW flatten; rows ordered (oi, oj, c2)
    wfc = params["fc_w"].reshape(hidden_dim, C2_OUT, Ho2, Wo2)
    wfc = wfc.transpose(2, 3, 1, 0).reshape(Ho2 * Wo2 * C2_OUT, hidden_dim)
    bfc = params["fc_b"].reshape(1, hidden_dim)
    wv = params["value_w"].T                                           # (hidden, 1)
    bv = params["value_b"].reshape(1, 1)
    return {"w1": w1, "b1": b1, "w2": w2, "b2": b2,
            "wfc": wfc, "bfc": bfc, "wv": wv, "bv": bv}


@jax.jit
def critic_forward(prep, x):
    """x: (B, C, H, W) NCHW float32 -> value (B, 1) float32."""
    patches1 = _conv1_patches_offset_major(x)
    return critic_fused_call(patches1, prep, x.shape[0])


# ------------------------------ plain-JAX reference ----------------------------- #

def _reference_forward(params, x, feature_size):
    dn = ("NCHW", "OIHW", "NCHW")
    h1 = jax.nn.relu(lax.conv_general_dilated(
        x, params["conv1_w"], (S1, S1), "VALID", dimension_numbers=dn)
        + params["conv1_b"][None, :, None, None])
    h2 = jax.nn.relu(lax.conv_general_dilated(
        h1, params["conv2_w"], (S2, S2), "VALID", dimension_numbers=dn)
        + params["conv2_b"][None, :, None, None])
    feats = h2.reshape(x.shape[0], feature_size)
    h3 = jax.nn.relu(feats @ params["fc_w"].T + params["fc_b"])
    return h3 @ params["value_w"].T + params["value_b"]


if __name__ == "__main__":
    # Smallest shapes consistent with the conv stack (spatial must survive
    # kernel 8 stride 4 then kernel 4 stride 2): C=4, H=W=36 (-> 3x3x32 features).
    input_shape = (4, 36, 36)
    batch = 2
    hidden_dim = 64

    params, feature_size = init_params(input_shape, hidden_dim=hidden_dim, seed=0)
    prep = prepare_params(params, input_shape, hidden_dim)   # one-time weight prep

    x = jax.random.normal(jax.random.PRNGKey(0), (batch,) + input_shape,
                          dtype=jnp.float32)

    value = critic_forward(prep, x)
    jax.block_until_ready(value)

    assert value.shape == (batch, 1), value.shape
    assert value.dtype == jnp.float32

    # Loose sanity check vs plain-JAX reference (MXU f32 GEMMs may use a bf16
    # multi-pass decomposition, so the tolerance is intentionally generous).
    ref = _reference_forward(params, x, feature_size)
    assert float(jnp.max(jnp.abs(value - ref))) < 5e-2, (value, ref)

    print("KERNEL_OK")
</pallas_src>

<mosaic_0001>
module attributes {stable_mosaic.version = 11 : i64} {
  func.func @_critic_fused_kernel(%arg0: memref<288x256xf32, #tpu.memory_space<vmem>>, %arg1: memref<256x16xf32, #tpu.memory_space<vmem>>, %arg2: memref<1x256xf32, #tpu.memory_space<vmem>>, %arg3: memref<256x32xf32, #tpu.memory_space<vmem>>, %arg4: memref<1x32xf32, #tpu.memory_space<vmem>>, %arg5: memref<288x64xf32, #tpu.memory_space<vmem>>, %arg6: memref<1x64xf32, #tpu.memory_space<vmem>>, %arg7: memref<64x1xf32, #tpu.memory_space<vmem>>, %arg8: memref<1x1xf32, #tpu.memory_space<vmem>>, %arg9: memref<2x1xf32, #tpu.memory_space<vmem>>, %arg10: memref<288x16xf32, #tpu.memory_space<vmem>>, %arg11: memref<18x256xf32, #tpu.memory_space<vmem>>, %arg12: memref<2x288xf32, #tpu.memory_space<vmem>>) attributes {dimension_semantics = [], scalar_prefetch = 0 : i64, scratch_operands = 3 : i64, tpu.core_type = #tpu.core_type<tc>} {
    %c0 = arith.constant 0 : index
    %c0_0 = arith.constant 0 : index
    %0 = vector.load %arg0[%c0, %c0_0] : memref<288x256xf32, #tpu.memory_space<vmem>>, vector<288x256xf32>
    %c0_1 = arith.constant 0 : index
    %c0_2 = arith.constant 0 : index
    %1 = vector.load %arg1[%c0_1, %c0_2] : memref<256x16xf32, #tpu.memory_space<vmem>>, vector<256x16xf32>
    %cst = arith.constant dense<0.000000e+00> : vector<288x16xf32>
    %2 = tpu.matmul %0, %1, %cst {dimension_numbers = #tpu.dot_dimension_numbers<[1], [0], [0], [1], [0, 0, 1, 1], [], []>} : vector<288x256xf32>, vector<256x16xf32>, vector<288x16xf32> -> vector<288x16xf32>
    %c0_3 = arith.constant 0 : index
    %c0_4 = arith.constant 0 : index
    %3 = vector.load %arg10[%c0_3, %c0_4] : memref<288x16xf32, #tpu.memory_space<vmem>>, vector<288x16xf32>
    tpu.vector_store %arg10[%c0_3, %c0_4], %2 {strides = array<i32>} : memref<288x16xf32, #tpu.memory_space<vmem>>, vector<288x16xf32>,
    %c0_5 = arith.constant 0 : index
    %c0_6 = arith.constant 0 : index
    %4 = vector.load %arg10[%c0_5, %c0_6] : memref<288x16xf32, #tpu.memory_space<vmem>>, vector<18x16xf32>
    %c0_7 = arith.constant 0 : index
    %c0_8 = arith.constant 0 : index
    %5 = vector.load %arg11[%c0_7, %c0_8] : memref<18x256xf32, #tpu.memory_space<vmem>>, vector<18x16xf32>
    tpu.vector_store %arg11[%c0_7, %c0_8], %4 {strides = array<i32>} : memref<18x256xf32, #tpu.memory_space<vmem>>, vector<18x16xf32>,
    %c18 = arith.constant 18 : index
    %c0_9 = arith.constant 0 : index
    %6 = vector.load %arg10[%c18, %c0_9] : memref<288x16xf32, #tpu.memory_space<vmem>>, vector<18x16xf32>
    %c0_10 = arith.constant 0 : index
    %c16 = arith.constant 16 : index
    %7 = vector.load %arg11[%c0_10, %c16] : memref<18x256xf32, #tpu.memory_space<vmem>>, vector<18x16xf32>
    tpu.vector_store %arg11[%c0_10, %c16], %6 {strides = array<i32>} : memref<18x256xf32, #tpu.memory_space<vmem>>, vector<18x16xf32>,
    %c36 = arith.constant 36 : index
    %c0_11 = arith.constant 0 : index
    %8 = vector.load %arg10[%c36, %c0_11] : memref<288x16xf32, #tpu.memory_space<vmem>>, vector<18x16xf32>
    %c0_12 = arith.constant 0 : index
    %c32 = arith.constant 32 : index
    %9 = vector.load %arg11[%c0_12, %c32] : memref<18x256xf32, #tpu.memory_space<vmem>>, vector<18x16xf32>
    tpu.vector_store %arg11[%c0_12, %c32], %8 {strides = array<i32>} : memref<18x256xf32, #tpu.memory_space<vmem>>, vector<18x16xf32>,
    %c54 = arith.constant 54 : index
    %c0_13 = arith.constant 0 : index
    %10 = vector.load %arg10[%c54, %c0_13] : memref<288x16xf32, #tpu.memory_space<vmem>>, vector<18x16xf32>
    %c0_14 = arith.constant 0 : index
    %c48 = arith.constant 48 : index
    %11 = vector.load %arg11[%c0_14, %c48] : memref<18x256xf32, #tpu.memory_space<vmem>>, vector<18x16xf32>
    tpu.vector_store %arg11[%c0_14, %c48], %10 {strides = array<i32>} : memref<18x256xf32, #tpu.memory_space<vmem>>, vector<18x16xf32>,
    %c72 = arith.constant 72 : index
    %c0_15 = arith.constant 0 : index
    %12 = vector.load %arg10[%c72, %c0_15] : memref<288x16xf32, #tpu.memory_space<vmem>>, vector<18x16xf32>
    %c0_16 = arith.constant 0 : index
    %c64 = arith.constant 64 : index
    %13 = vector.load %arg11[%c0_16, %c64] : memref<18x256xf32, #tpu.memory_space<vmem>>, vector<18x16xf32>
    tpu.vector_store %arg11[%c0_16, %c64], %12 {strides = array<i32>} : memref<18x256xf32, #tpu.memory_space<vmem>>, vector<18x16xf32>,
    %c90 = arith.constant 90 : index
    %c0_17 = arith.constant 0 : index
    %14 = vector.load %arg10[%c90, %c0_17] : memref<288x16xf32, #tpu.memory_space<vmem>>, vector<18x16xf32>
    %c0_18 = arith.constant 0 : index
    %c80 = arith.constant 80 : index
    %15 = vector.load %arg11[%c0_18, %c80] : memref<18x256xf32, #tpu.memory_space<vmem>>, vector<18x16xf32>
    tpu.vector_store %arg11[%c0_18, %c80], %14 {strides = array<i32>} : memref<18x256xf32, #tpu.memory_space<vmem>>, vector<18x16xf32>,
    %c108 = arith.constant 108 : index
    %c0_19 = arith.constant 0 : index
    %16 = vector.load %arg10[%c108, %c0_19] : memref<288x16xf32, #tpu.memory_space<vmem>>, vector<18x16xf32>
    %c0_20 = arith.constant 0 : index
    %c96 = arith.constant 96 : index
    %17 = vector.load %arg11[%c0_20, %c96] : memref<18x256xf32, #tpu.memory_space<vmem>>, vector<18x16xf32>
    tpu.vector_store %arg11[%c0_20, %c96], %16 {strides = array<i32>} : memref<18x256xf32, #tpu.memory_space<vmem>>, vector<18x16xf32>,
    %c126 = arith.constant 126 : index
    %c0_21 = arith.constant 0 : index
    %18 = vector.load %arg10[%c126, %c0_21] : memref<288x16xf32, #tpu.memory_space<vmem>>, vector<18x16xf32>
    %c0_22 = arith.constant 0 : index
    %c112 = arith.constant 112 : index
    %19 = vector.load %arg11[%c0_22, %c112] : memref<18x256xf32, #tpu.memory_space<vmem>>, vector<18x16xf32>
    tpu.vector_store %arg11[%c0_22, %c112], %18 {strides = array<i32>} : memref<18x256xf32, #tpu.memory_space<vmem>>, vector<18x16xf32>,
    %c144 = arith.constant 144 : index
    %c0_23 = arith.constant 0 : index
    %20 = vector.load %arg10[%c144, %c0_23] : memref<288x16xf32, #tpu.memory_space<vmem>>, vector<18x16xf32>
    %c0_24 = arith.constant 0 : index
    %c128 = arith.constant 128 : index
    %21 = vector.load %arg11[%c0_24, %c128] : memref<18x256xf32, #tpu.memory_space<vmem>>, vector<18x16xf32>
    tpu.vector_store %arg11[%c0_24, %c128], %20 {strides = array<i32>} : memref<18x256xf32, #tpu.memory_space<vmem>>, vector<18x16xf32>,
    %c162 = arith.constant 162 : index
    %c0_25 = arith.constant 0 : index
    %22 = vector.load %arg10[%c162, %c0_25] : memref<288x16xf32, #tpu.memory_space<vmem>>, vector<18x16xf32>
    %c0_26 = arith.constant 0 : index
    %c144_27 = arith.constant 144 : index
    %23 = vector.load %arg11[%c0_26, %c144_27] : memref<18x256xf32, #tpu.memory_space<vmem>>, vector<18x16xf32>
    tpu.vector_store %arg11[%c0_26, %c144_27], %22 {strides = array<i32>} : memref<18x256xf32, #tpu.memory_space<vmem>>, vector<18x16xf32>,
    %c180 = arith.constant 180 : index
    %c0_28 = arith.constant 0 : index
    %24 = vector.load %arg10[%c180, %c0_28] : memref<288x16xf32, #tpu.memory_space<vmem>>, vector<18x16xf32>
    %c0_29 = arith.constant 0 : index
    %c160 = arith.constant 160 : index
    %25 = vector.load %arg11[%c0_29, %c160] : memref<18x256xf32, #tpu.memory_space<vmem>>, vector<18x16xf32>
    tpu.vector_store %arg11[%c0_29, %c160], %24 {strides = array<i32>} : memref<18x256xf32, #tpu.memory_space<vmem>>, vector<18x16xf32>,
    %c198 = arith.constant 198 : index
    %c0_30 = arith.constant 0 : index
    %26 = vector.load %arg10[%c198, %c0_30] : memref<288x16xf32, #tpu.memory_space<vmem>>, vector<18x16xf32>
    %c0_31 = arith.constant 0 : index
    %c176 = arith.constant 176 : index
    %27 = vector.load %arg11[%c0_31, %c176] : memref<18x256xf32, #tpu.memory_space<vmem>>, vector<18x16xf32>
    tpu.vector_store %arg11[%c0_31, %c176], %26 {strides = array<i32>} : memref<18x256xf32, #tpu.memory_space<vmem>>, vector<18x16xf32>,
    %c216 = arith.constant 216 : index
    %c0_32 = arith.constant 0 : index
    %28 = vector.load %arg10[%c216, %c0_32] : memref<288x16xf32, #tpu.memory_space<vmem>>, vector<18x16xf32>
    %c0_33 = arith.constant 0 : index
    %c192 = arith.constant 192 : index
    %29 = vector.load %arg11[%c0_33, %c192] : memref<18x256xf32, #tpu.memory_space<vmem>>, vector<18x16xf32>
    tpu.vector_store %arg11[%c0_33, %c192], %28 {strides = array<i32>} : memref<18x256xf32, #tpu.memory_space<vmem>>, vector<18x16xf32>,
    %c234 = arith.constant 234 : index
    %c0_34 = arith.constant 0 : index
    %30 = vector.load %arg10[%c234, %c0_34] : memref<288x16xf32, #tpu.memory_space<vmem>>, vector<18x16xf32>
    %c0_35 = arith.constant 0 : index
    %c208 = arith.constant 208 : index
    %31 = vector.load %arg11[%c0_35, %c208] : memref<18x256xf32, #tpu.memory_space<vmem>>, vector<18x16xf32>
    tpu.vector_store %arg11[%c0_35, %c208], %30 {strides = array<i32>} : memref<18x256xf32, #tpu.memory_space<vmem>>, vector<18x16xf32>,
    %c252 = arith.constant 252 : index
    %c0_36 = arith.constant 0 : index
    %32 = vector.load %arg10[%c252, %c0_36] : memref<288x16xf32, #tpu.memory_space<vmem>>, vector<18x16xf32>
    %c0_37 = arith.constant 0 : index
    %c224 = arith.constant 224 : index
    %33 = vector.load %arg11[%c0_37, %c224] : memref<18x256xf32, #tpu.memory_space<vmem>>, vector<18x16xf32>
    tpu.vector_store %arg11[%c0_37, %c224], %32 {strides = array<i32>} : memref<18x256xf32, #tpu.memory_space<vmem>>, vector<18x16xf32>,
    %c270 = arith.constant 270 : index
    %c0_38 = arith.constant 0 : index
    %34 = vector.load %arg10[%c270, %c0_38] : memref<288x16xf32, #tpu.memory_space<vmem>>, vector<18x16xf32>
    %c0_39 = arith.constant 0 : index
    %c240 = arith.constant 240 : index
    %35 = vector.load %arg11[%c0_39, %c240] : memref<18x256xf32, #tpu.memory_space<vmem>>, vector<18x16xf32>
    tpu.vector_store %arg11[%c0_39, %c240], %34 {strides = array<i32>} : memref<18x256xf32, #tpu.memory_space<vmem>>, vector<18x16xf32>,
    %c0_40 = arith.constant 0 : index
    %c0_41 = arith.constant 0 : index
    %36 = vector.load %arg11[%c0_40, %c0_41] : memref<18x256xf32, #tpu.memory_space<vmem>>, vector<18x256xf32>
    %c0_42 = arith.constant 0 : index
    %c0_43 = arith.constant 0 : index
    %37 = vector.load %arg2[%c0_42, %c0_43] : memref<1x256xf32, #tpu.memory_space<vmem>>, vector<1x256xf32>
    %38 = vector.broadcast %37 : vector<1x256xf32> to vector<18x256xf32>
    %39 = arith.addf %36, %38 : vector<18x256xf32>
    %cst_44 = arith.constant 0.000000e+00 : f32
    %40 = vector.broadcast %cst_44 : f32 to vector<18x256xf32>
    %41 = arith.maximumf %39, %40 : vector<18x256xf32>
    %c0_45 = arith.constant 0 : index
    %c0_46 = arith.constant 0 : index
    %42 = vector.load %arg3[%c0_45, %c0_46] : memref<256x32xf32, #tpu.memory_space<vmem>>, vector<256x32xf32>
    %cst_47 = arith.constant dense<0.000000e+00> : vector<18x32xf32>
    %43 = tpu.matmul %41, %42, %cst_47 {dimension_numbers = #tpu.dot_dimension_numbers<[1], [0], [0], [1], [0, 0, 1, 1], [], []>} : vector<18x256xf32>, vector<256x32xf32>, vector<18x32xf32> -> vector<18x32xf32>
    %c0_48 = arith.constant 0 : index
    %c0_49 = arith.constant 0 : index
    %44 = vector.load %arg4[%c0_48, %c0_49] : memref<1x32xf32, #tpu.memory_space<vmem>>, vector<1x32xf32>
    %45 = vector.broadcast %44 : vector<1x32xf32> to vector<18x32xf32>
    %46 = arith.addf %43, %45 : vector<18x32xf32>
    %cst_50 = arith.constant 0.000000e+00 : f32
    %47 = vector.broadcast %cst_50 : f32 to vector<18x32xf32>
    %48 = arith.maximumf %46, %47 : vector<18x32xf32>
    %49 = vector.extract_strided_slice %48 {offsets = [0, 0], sizes = [2, 32], strides = [1, 1]} : vector<18x32xf32> to vector<2x32xf32>
    %c0_51 = arith.constant 0 : index
    %c0_52 = arith.constant 0 : index
    %50 = vector.load %arg12[%c0_51, %c0_52] : memref<2x288xf32, #tpu.memory_space<vmem>>, vector<2x32xf32>
    tpu.vector_store %arg12[%c0_51, %c0_52], %49 {strides = array<i32>} : memref<2x288xf32, #tpu.memory_space<vmem>>, vector<2x32xf32>,
    %51 = vector.extract_strided_slice %48 {offsets = [2, 0], sizes = [2, 32], strides = [1, 1]} : vector<18x32xf32> to vector<2x32xf32>
    %c0_53 = arith.constant 0 : index
    %c32_54 = arith.constant 32 : index
    %52 = vector.load %arg12[%c0_53, %c32_54] : memref<2x288xf32, #tpu.memory_space<vmem>>, vector<2x32xf32>
    tpu.vector_store %arg12[%c0_53, %c32_54], %51 {strides = array<i32>} : memref<2x288xf32, #tpu.memory_space<vmem>>, vector<2x32xf32>,
    %53 = vector.extract_strided_slice %48 {offsets = [4, 0], sizes = [2, 32], strides = [1, 1]} : vector<18x32xf32> to vector<2x32xf32>
    %c0_55 = arith.constant 0 : index
    %c64_56 = arith.constant 64 : index
    %54 = vector.load %arg12[%c0_55, %c64_56] : memref<2x288xf32, #tpu.memory_space<vmem>>, vector<2x32xf32>
    tpu.vector_store %arg12[%c0_55, %c64_56], %53 {strides = array<i32>} : memref<2x288xf32, #tpu.memory_space<vmem>>, vector<2x32xf32>,
    %55 = vector.extract_strided_slice %48 {offsets = [6, 0], sizes = [2, 32], strides = [1, 1]} : vector<18x32xf32> to vector<2x32xf32>
    %c0_57 = arith.constant 0 : index
    %c96_58 = arith.constant 96 : index
    %56 = vector.load %arg12[%c0_57, %c96_58] : memref<2x288xf32, #tpu.memory_space<vmem>>, vector<2x32xf32>
    tpu.vector_store %arg12[%c0_57, %c96_58], %55 {strides = array<i32>} : memref<2x288xf32, #tpu.memory_space<vmem>>, vector<2x32xf32>,
    %57 = vector.extract_strided_slice %48 {offsets = [8, 0], sizes = [2, 32], strides = [1, 1]} : vector<18x32xf32> to vector<2x32xf32>
    %c0_59 = arith.constant 0 : index
    %c128_60 = arith.constant 128 : index
    %58 = vector.load %arg12[%c0_59, %c128_60] : memref<2x288xf32, #tpu.memory_space<vmem>>, vector<2x32xf32>
    tpu.vector_store %arg12[%c0_59, %c128_60], %57 {strides = array<i32>} : memref<2x288xf32, #tpu.memory_space<vmem>>, vector<2x32xf32>,
    %59 = vector.extract_strided_slice %48 {offsets = [10, 0], sizes = [2, 32], strides = [1, 1]} : vector<18x32xf32> to vector<2x32xf32>
    %c0_61 = arith.constant 0 : index
    %c160_62 = arith.constant 160 : index
    %60 = vector.load %arg12[%c0_61, %c160_62] : memref<2x288xf32, #tpu.memory_space<vmem>>, vector<2x32xf32>
    tpu.vector_store %arg12[%c0_61, %c160_62], %59 {strides = array<i32>} : memref<2x288xf32, #tpu.memory_space<vmem>>, vector<2x32xf32>,
    %61 = vector.extract_strided_slice %48 {offsets = [12, 0], sizes = [2, 32], strides = [1, 1]} : vector<18x32xf32> to vector<2x32xf32>
    %c0_63 = arith.constant 0 : index
    %c192_64 = arith.constant 192 : index
    %62 = vector.load %arg12[%c0_63, %c192_64] : memref<2x288xf32, #tpu.memory_space<vmem>>, vector<2x32xf32>
    tpu.vector_store %arg12[%c0_63, %c192_64], %61 {strides = array<i32>} : memref<2x288xf32, #tpu.memory_space<vmem>>, vector<2x32xf32>,
    %63 = vector.extract_strided_slice %48 {offsets = [14, 0], sizes = [2, 32], strides = [1, 1]} : vector<18x32xf32> to vector<2x32xf32>
    %c0_65 = arith.constant 0 : index
    %c224_66 = arith.constant 224 : index
    %64 = vector.load %arg12[%c0_65, %c224_66] : memref<2x288xf32, #tpu.memory_space<vmem>>, vector<2x32xf32>
    tpu.vector_store %arg12[%c0_65, %c224_66], %63 {strides = array<i32>} : memref<2x288xf32, #tpu.memory_space<vmem>>, vector<2x32xf32>,
    %65 = vector.extract_strided_slice %48 {offsets = [16, 0], sizes = [2, 32], strides = [1, 1]} : vector<18x32xf32> to vector<2x32xf32>
    %c0_67 = arith.constant 0 : index
    %c256 = arith.constant 256 : index
    %66 = vector.load %arg12[%c0_67, %c256] : memref<2x288xf32, #tpu.memory_space<vmem>>, vector<2x32xf32>
    tpu.vector_store %arg12[%c0_67, %c256], %65 {strides = array<i32>} : memref<2x288xf32, #tpu.memory_space<vmem>>, vector<2x32xf32>,
    %c0_68 = arith.constant 0 : index
    %c0_69 = arith.constant 0 : index
    %67 = vector.load %arg12[%c0_68, %c0_69] : memref<2x288xf32, #tpu.memory_space<vmem>>, vector<2x288xf32>
    %c0_70 = arith.constant 0 : index
    %c0_71 = arith.constant 0 : index
    %68 = vector.load %arg5[%c0_70, %c0_71] : memref<288x64xf32, #tpu.memory_space<vmem>>, vector<288x64xf32>
    %cst_72 = arith.constant dense<0.000000e+00> : vector<2x64xf32>
    %69 = tpu.matmul %67, %68, %cst_72 {dimension_numbers = #tpu.dot_dimension_numbers<[1], [0], [0], [1], [0, 0, 1, 1], [], []>} : vector<2x288xf32>, vector<288x64xf32>, vector<2x64xf32> -> vector<2x64xf32>
    %c0_73 = arith.constant 0 : index
    %c0_74 = arith.constant 0 : index
    %70 = vector.load %arg6[%c0_73, %c0_74] : memref<1x64xf32, #tpu.memory_space<vmem>>, vector<1x64xf32>
    %71 = vector.broadcast %70 : vector<1x64xf32> to vector<2x64xf32>
    %72 = arith.addf %69, %71 : vector<2x64xf32>
    %cst_75 = arith.constant 0.000000e+00 : f32
    %73 = vector.broadcast %cst_75 : f32 to vector<2x64xf32>
    %74 = arith.maximumf %72, %73 : vector<2x64xf32>
    %c0_76 = arith.constant 0 : index
    %c0_77 = arith.constant 0 : index
    %75 = vector.load %arg7[%c0_76, %c0_77] : memref<64x1xf32, #tpu.memory_space<vmem>>, vector<64x1xf32>
    %cst_78 = arith.constant dense<0.000000e+00> : vector<2x1xf32>
    %76 = tpu.matmul %74, %75, %cst_78 {dimension_numbers = #tpu.dot_dimension_numbers<[1], [0], [0], [1], [0, 0, 1, 1], [], []>} : vector<2x64xf32>, vector<64x1xf32>, vector<2x1xf32> -> vector<2x1xf32>
    %c0_79 = arith.constant 0 : index
    %c0_80 = arith.constant 0 : index
    %77 = vector.load %arg8[%c0_79, %c0_80] : memref<1x1xf32, #tpu.memory_space<vmem>>, vector<1x1xf32>
    %78 = vector.broadcast %77 : vector<1x1xf32> to vector<2x1xf32>
    %79 = arith.addf %76, %78 : vector<2x1xf32>
    %c0_81 = arith.constant 0 : index
    %c0_82 = arith.constant 0 : index
    %80 = vector.load %arg9[%c0_81, %c0_82] : memref<2x1xf32, #tpu.memory_space<vmem>>, vector<2x1xf32>
    tpu.vector_store %arg9[%c0_81, %c0_82], %79 {strides = array<i32>} : memref<2x1xf32, #tpu.memory_space<vmem>>, vector<2x1xf32>,
    return
  }
}

</mosaic_0001>

<llo_original>
// kernel: critic_forward.1
$region0: #{critic_forward.1}
  #allocation0 [shape = 'u32[]', space=smem, size = 0x4, offset = 0x4, fixed_abs, tag = 'smem constant byte address 0x4 - core index']
  #allocation1 [shape = 'u32[144,128]{1,0:T(1,128)}', space=vmem, size = 0x12000, scoped, tag = 'internal scratch']
  #allocation2 [shape = 'f32[288,16]{1,0:T(8,128)}', space=vmem, size = 0x24000, scoped, tag = 'scratch operand']
  #allocation3 [shape = 'f32[18,256]{1,0:T(8,128)}', space=vmem, size = 0x6000, scoped, tag = 'scratch operand']
  #allocation4 [shape = 'f32[2,288]{1,0:T(2,128)}', space=vmem, size = 0xc00, scoped, tag = 'scratch operand']
  #allocation5 [shape = 'f32[1,1]{1,0:T(1,128)S(1)}', space=vmem, size = 0x200, scoped, tag = 'scoped memory for critic_forward.1']
  %s0 = inlined_call_operand.vmem [shape: f32[288,256], index: 0, kind: input, shape index: {}]
  %s1 = inlined_call_operand.vmem [shape: f32[256,16], index: 1, kind: input, shape index: {}]
  %s2 = inlined_call_operand.vmem [shape: f32[1,256], index: 2, kind: input, shape index: {}]
  %s3 = inlined_call_operand.vmem [shape: f32[256,32], index: 3, kind: input, shape index: {}]
  %s4 = inlined_call_operand.vmem [shape: f32[1,32], index: 4, kind: input, shape index: {}]
  %s5 = inlined_call_operand.vmem [shape: f32[288,64], index: 5, kind: input, shape index: {}]
  %s6 = inlined_call_operand.vmem [shape: f32[1,64], index: 6, kind: input, shape index: {}]
  %s7 = inlined_call_operand.vmem [shape: f32[64,1], index: 7, kind: input, shape index: {}]
  %s8 = inlined_call_operand.<no memory space> [shape: f32[1,1], index: 8, kind: input, shape index: {}]
  %s9 = inlined_call_operand.vmem [shape: f32[2,1], index: 9, kind: output, shape index: {}]
  %s10 = sld [smem:[#allocation0]]
  $region46: #{critic_forward.1} parent=0
    _
  %s12 = ssub.s32 1, %s10
  %s13 = scalar_select 0, %s12, %s10
  %v14 = vstv %s8
  %15 = vst [vmem:[#allocation5] sm:$0x1] %v14
  // Predicated region
  $region2: #{critic_forward.1} parent=0 // pred_check
    _
  $region3: #{critic_forward.1} parent=0 // pred_check_branch
    %17 = sbr.rel (0) target = $region5
  $region4: #{critic_forward.1} parent=0 // pred_region
    _
  $region5: #{critic_forward.1} parent=0 // pred_fallthru
    _
  // Predicated region
  $region6: #{critic_forward.1} parent=0 // pred_check
    _
  $region7: #{critic_forward.1} parent=0 // pred_check_branch
    %19 = sbr.rel (0) target = $region9
  $region8: #{critic_forward.1} parent=0 // pred_region
    _
  $region9: #{critic_forward.1} parent=0 // pred_fallthru
    _
  // Predicated region
  $region10: #{critic_forward.1} parent=0 // pred_check
    _
  $region11: #{critic_forward.1} parent=0 // pred_check_branch
    %21 = sbr.rel (0) target = $region13
  $region12: #{critic_forward.1} parent=0 // pred_region
    _
  $region13: #{critic_forward.1} parent=0 // pred_fallthru
    _
  // Predicated region
  $region14: #{critic_forward.1} parent=0 // pred_check
    _
  $region15: #{critic_forward.1} parent=0 // pred_check_branch
    %23 = sbr.rel (0) target = $region17
  $region16: #{critic_forward.1} parent=0 // pred_region
    _
  $region17: #{critic_forward.1} parent=0 // pred_fallthru
    _
  // Predicated region
  $region18: #{critic_forward.1} parent=0 // pred_check
    _
  $region19: #{critic_forward.1} parent=0 // pred_check_branch
    %25 = sbr.rel (0) target = $region21
  $region20: #{critic_forward.1} parent=0 // pred_region
    _
  $region21: #{critic_forward.1} parent=0 // pred_fallthru
    _
  // Predicated region
  $region22: #{critic_forward.1} parent=0 // pred_check
    _
  $region23: #{critic_forward.1} parent=0 // pred_check_branch
    %27 = sbr.rel (0) target = $region25
  $region24: #{critic_forward.1} parent=0 // pred_region
    _
  $region25: #{critic_forward.1} parent=0 // pred_fallthru
    _
  // Predicated region
  $region26: #{critic_forward.1} parent=0 // pred_check
    _
  $region27: #{critic_forward.1} parent=0 // pred_check_branch
    %29 = sbr.rel (0) target = $region29
  $region28: #{critic_forward.1} parent=0 // pred_region
    _
  $region29: #{critic_forward.1} parent=0 // pred_fallthru
    _
  // Predicated region
  $region30: #{critic_forward.1} parent=0 // pred_check
    _
  $region31: #{critic_forward.1} parent=0 // pred_check_branch
    %31 = sbr.rel (0) target = $region33
  $region32: #{critic_forward.1} parent=0 // pred_region
    _
  $region33: #{critic_forward.1} parent=0 // pred_fallthru
    _
  // Predicated region
  $region34: #{critic_forward.1} parent=0 // pred_check
    _
  $region35: #{critic_forward.1} parent=0 // pred_check_branch
    %33 = sbr.rel (0) target = $region37
  $region36: #{critic_forward.1} parent=0 // pred_region
    _
  $region37: #{critic_forward.1} parent=0 // pred_fallthru
    _
  %v34 = vld [vmem:[%s0] sm:$0xff]
  %v35 = vld [vmem:[%s0 + $0x8] sm:$0xff]
  %v36 = vld [vmem:[%s0 + $0x10] sm:$0xff]
  %v37 = vld [vmem:[%s0 + $0x18] sm:$0xff]
  %v38 = vld [vmem:[%s0 + $0x20] sm:$0xff]
  %v39 = vld [vmem:[%s0 + $0x28] sm:$0xff]
  %v40 = vld [vmem:[%s0 + $0x30] sm:$0xff]
  %v41 = vld [vmem:[%s0 + $0x38] sm:$0xff]
  %v42 = vld [vmem:[%s0 + $0x40] sm:$0xff]
  %v43 = vld [vmem:[%s0 + $0x48] sm:$0xff]
  %v44 = vld [vmem:[%s0 + $0x50] sm:$0xff]
  %v45 = vld [vmem:[%s0 + $0x58] sm:$0xff]
  %v46 = vld [vmem:[%s0 + $0x60] sm:$0xff]
  %v47 = vld [vmem:[%s0 + $0x68] sm:$0xff]
  %v48 = vld [vmem:[%s0 + $0x70] sm:$0xff]
  %v49 = vld [vmem:[%s0 + $0x78] sm:$0xff]
  %v50 = vld [vmem:[%s0 + $0x80] sm:$0xff]
  %v51 = vld [vmem:[%s0 + $0x88] sm:$0xff]
  %v52 = vld [vmem:[%s0 + $0x90] sm:$0xff]
  %v53 = vld [vmem:[%s0 + $0x98] sm:$0xff]
  %v54 = vld [vmem:[%s0 + $0xa0] sm:$0xff]
  %v55 = vld [vmem:[%s0 + $0xa8] sm:$0xff]
  %v56 = vld [vmem:[%s0 + $0xb0] sm:$0xff]
  %v57 = vld [vmem:[%s0 + $0xb8] sm:$0xff]
  %v58 = vld [vmem:[%s0 + $0xc0] sm:$0xff]
  %v59 = vld [vmem:[%s0 + $0xc8] sm:$0xff]
  %v60 = vld [vmem:[%s0 + $0xd0] sm:$0xff]
  %v61 = vld [vmem:[%s0 + $0xd8] sm:$0xff]
  %v62 = vld [vmem:[%s0 + $0xe0] sm:$0xff]
  %v63 = vld [vmem:[%s0 + $0xe8] sm:$0xff]
  %v64 = vld [vmem:[%s0 + $0xf0] sm:$0xff]
  %v65 = vld [vmem:[%s0 + $0xf8] sm:$0xff]
  %v66 = vld [vmem:[%s0 + $0x100] sm:$0xff]
  %v67 = vld [vmem:[%s0 + $0x108] sm:$0xff]
  %v68 = vld [vmem:[%s0 + $0x110] sm:$0xff]
  %v69 = vld [vmem:[%s0 + $0x118] sm:$0xff]
  %v70 = vld [vmem:[%s0 + $0x120] sm:$0xff]
  %v71 = vld [vmem:[%s0 + $0x128] sm:$0xff]
  %v72 = vld [vmem:[%s0 + $0x130] sm:$0xff]
  %v73 = vld [vmem:[%s0 + $0x138] sm:$0xff]
  %v74 = vld [vmem:[%s0 + $0x140] sm:$0xff]
  %v75 = vld [vmem:[%s0 + $0x148] sm:$0xff]
  %v76 = vld [vmem:[%s0 + $0x150] sm:$0xff]
  %v77 = vld [vmem:[%s0 + $0x158] sm:$0xff]
  %v78 = vld [vmem:[%s0 + $0x160] sm:$0xff]
  %v79 = vld [vmem:[%s0 + $0x168] sm:$0xff]
  %v80 = vld [vmem:[%s0 + $0x170] sm:$0xff]
  %v81 = vld [vmem:[%s0 + $0x178] sm:$0xff]
  %v82 = vld [vmem:[%s0 + $0x180] sm:$0xff]
  %v83 = vld [vmem:[%s0 + $0x188] sm:$0xff]
  %v84 = vld [vmem:[%s0 + $0x190] sm:$0xff]
  %v85 = vld [vmem:[%s0 + $0x198] sm:$0xff]
  %v86 = vld [vmem:[%s0 + $0x1a0] sm:$0xff]
  %v87 = vld [vmem:[%s0 + $0x1a8] sm:$0xff]
  %v88 = vld [vmem:[%s0 + $0x1b0] sm:$0xff]
  %v89 = vld [vmem:[%s0 + $0x1b8] sm:$0xff]
  %v90 = vld [vmem:[%s0 + $0x1c0] sm:$0xff]
  %v91 = vld [vmem:[%s0 + $0x1c8] sm:$0xff]
  %v92 = vld [vmem:[%s0 + $0x1d0] sm:$0xff]
  %v93 = vld [vmem:[%s0 + $0x1d8] sm:$0xff]
  %v94 = vld [vmem:[%s0 + $0x1e0] sm:$0xff]
  %v95 = vld [vmem:[%s0 + $0x1e8] sm:$0xff]
  %v96 = vld [vmem:[%s0 + $0x1f0] sm:$0xff]
  %v97 = vld [vmem:[%s0 + $0x1f8] sm:$0xff]
  %v98 = vld [vmem:[%s0 + $0x200] sm:$0xff]
  %v99 = vld [vmem:[%s0 + $0x208] sm:$0xff]
  %v100 = vld [vmem:[%s0 + $0x210] sm:$0xff]
  %v101 = vld [vmem:[%s0 + $0x218] sm:$0xff]
  %v102 = vld [vmem:[%s0 + $0x220] sm:$0xff]
  %v103 = vld [vmem:[%s0 + $0x228] sm:$0xff]
  %v104 = vld [vmem:[%s0 + $0x230] sm:$0xff]
  %v105 = vld [vmem:[%s0 + $0x238] sm:$0xff]
  %v106 = vld [vmem:[%s1] sm:$0xff]
  %v107 = vld [vmem:[%s1 + $0x8] sm:$0xff]
  %v108 = vld [vmem:[%s1 + $0x10] sm:$0xff]
  %v109 = vld [vmem:[%s1 + $0x18] sm:$0xff]
  %v110 = vld [vmem:[%s1 + $0x20] sm:$0xff]
  %v111 = vld [vmem:[%s1 + $0x28] sm:$0xff]
  %v112 = vld [vmem:[%s1 + $0x30] sm:$0xff]
  %v113 = vld [vmem:[%s1 + $0x38] sm:$0xff]
  %v114 = vld [vmem:[%s1 + $0x40] sm:$0xff]
  %v115 = vld [vmem:[%s1 + $0x48] sm:$0xff]
  %v116 = vld [vmem:[%s1 + $0x50] sm:$0xff]
  %v117 = vld [vmem:[%s1 + $0x58] sm:$0xff]
  %v118 = vld [vmem:[%s1 + $0x60] sm:$0xff]
  %v119 = vld [vmem:[%s1 + $0x68] sm:$0xff]
  %v120 = vld [vmem:[%s1 + $0x70] sm:$0xff]
  %v121 = vld [vmem:[%s1 + $0x78] sm:$0xff]
  %v122 = vld [vmem:[%s1 + $0x80] sm:$0xff]
  %v123 = vld [vmem:[%s1 + $0x88] sm:$0xff]
  %v124 = vld [vmem:[%s1 + $0x90] sm:$0xff]
  %v125 = vld [vmem:[%s1 + $0x98] sm:$0xff]
  %v126 = vld [vmem:[%s1 + $0xa0] sm:$0xff]
  %v127 = vld [vmem:[%s1 + $0xa8] sm:$0xff]
  %v128 = vld [vmem:[%s1 + $0xb0] sm:$0xff]
  %v129 = vld [vmem:[%s1 + $0xb8] sm:$0xff]
  %v130 = vld [vmem:[%s1 + $0xc0] sm:$0xff]
  %v131 = vld [vmem:[%s1 + $0xc8] sm:$0xff]
  %v132 = vld [vmem:[%s1 + $0xd0] sm:$0xff]
  %v133 = vld [vmem:[%s1 + $0xd8] sm:$0xff]
  %v134 = vld [vmem:[%s1 + $0xe0] sm:$0xff]
  %v135 = vld [vmem:[%s1 + $0xe8] sm:$0xff]
  %v136 = vld [vmem:[%s1 + $0xf0] sm:$0xff]
  %v137 = vld [vmem:[%s1 + $0xf8] sm:$0xff]
  %138 = vmatprep.subr.mxu0 0.0
  %139 = vmatpush1.msra.mxu0 %v106
  %140 = vmatprep.subr.mxu0 0.0
  %141 = vmatpush1.msra.mxu0 %v107
  %142 = vmatprep.subr.mxu0 0.0
  %143 = vmatpush1.msra.mxu0 %v108
  %144 = vmatprep.subr.mxu0 0.0
  %145 = vmatpush1.msra.mxu0 %v109
  %146 = vmatprep.subr.mxu0 0.0
  %147 = vmatpush1.msra.mxu0 %v110
  %148 = vmatprep.subr.mxu0 0.0
  %149 = vmatpush1.msra.mxu0 %v111
  %150 = vmatprep.subr.mxu0 0.0
  %151 = vmatpush1.msra.mxu0 %v112
  %152 = vmatprep.subr.mxu0 0.0
  %153 = vmatpush1.msra.mxu0 %v113
  %154 = vmatprep.subr.mxu0 0.0
  %155 = vmatpush1.msra.mxu0 %v114
  %156 = vmatprep.subr.mxu0 0.0
  %157 = vmatpush1.msra.mxu0 %v115
  %158 = vmatprep.subr.mxu0 0.0
  %159 = vmatpush1.msra.mxu0 %v116
  %160 = vmatprep.subr.mxu0 0.0
  %161 = vmatpush1.msra.mxu0 %v117
  %162 = vmatprep.subr.mxu0 0.0
  %163 = vmatpush1.msra.mxu0 %v118
  %164 = vmatprep.subr.mxu0 0.0
  %165 = vmatpush1.msra.mxu0 %v119
  %166 = vmatprep.subr.mxu0 0.0
  %167 = vmatpush1.msra.mxu0 %v120
  %168 = vmatprep.subr.mxu0 0.0
  %169 = vmatpush1.msra.mxu0 %v121
  %170 = vmatprep.subr.mxu0 0.0
  %171 = vmatpush1.msra.mxu0 %v122
  %172 = vmatprep.subr.mxu0 0.0
  %173 = vmatpush1.msra.mxu0 %v123
  %174 = vmatprep.subr.mxu0 0.0
  %175 = vmatpush1.msra.mxu0 %v124
  %176 = vmatprep.subr.mxu0 0.0
  %177 = vmatpush1.msra.mxu0 %v125
  %178 = vmatprep.subr.mxu0 0.0
  %179 = vmatpush1.msra.mxu0 %v126
  %180 = vmatprep.subr.mxu0 0.0
  %181 = vmatpush1.msra.mxu0 %v127
  %182 = vmatprep.subr.mxu0 0.0
  %183 = vmatpush1.msra.mxu0 %v128
  %184 = vmatprep.subr.mxu0 0.0
  %185 = vmatpush1.msra.mxu0 %v129
  %186 = vmatprep.subr.mxu0 0.0
  %187 = vmatpush1.msra.mxu0 %v130
  %188 = vmatprep.subr.mxu0 0.0
  %189 = vmatpush1.msra.mxu0 %v131
  %190 = vmatprep.subr.mxu0 0.0
  %191 = vmatpush1.msra.mxu0 %v132
  %192 = vmatprep.subr.mxu0 0.0
  %193 = vmatpush1.msra.mxu0 %v133
  %194 = vmatprep.subr.mxu0 0.0
  %195 = vmatpush1.msra.mxu0 %v134
  %196 = vmatprep.subr.mxu0 0.0
  %197 = vmatpush1.msra.mxu0 %v135
  %198 = vmatprep.subr.mxu0 0.0
  %199 = vmatpush1.msra.mxu0 %v136
  %200 = vmatprep.subr.mxu0 0.0
  %201 = vmatpush1.msra.mxu0 %v137
  %202 = vmatprep.mubr.f32.mxu0 %v35
  %203 = vmatmul.mubr.f32.gmra.mrb[0].mxu0 %v34
  %v204 = vpop.f32.mrb[0].mxu0
  %v205 = vadd.f32 0.0, %v204
  %v206 = vpop.f32.mrb[0].mxu0
  %207 = vmatprep.mubr.f32.mxu0 %v37
  %208 = vmatmul.mubr.f32.gmra.mrb[0].mxu0 %v36
  %v209 = vpop.f32.mrb[0].mxu0
  %v210 = vadd.f32 0.0, %v209
  %v211 = vpop.f32.mrb[0].mxu0
  %212 = vmatprep.mubr.f32.mxu0 %v39
  %213 = vmatmul.mubr.f32.gmra.mrb[0].mxu0 %v38
  %v214 = vpop.f32.mrb[0].mxu0
  %v215 = vadd.f32 0.0, %v214
  %v216 = vpop.f32.mrb[0].mxu0
  %217 = vmatprep.mubr.f32.mxu0 %v41
  %218 = vmatmul.mubr.f32.gmra.mrb[0].mxu0 %v40
  %v219 = vpop.f32.mrb[0].mxu0
  %v220 = vadd.f32 0.0, %v219
  %v221 = vpop.f32.mrb[0].mxu0
  %222 = vmatprep.mubr.f32.mxu0 %v43
  %223 = vmatmul.mubr.f32.gmra.mrb[0].mxu0 %v42
  %v224 = vpop.f32.mrb[0].mxu0
  %v225 = vadd.f32 0.0, %v224
  %v226 = vpop.f32.mrb[0].mxu0
  %227 = vmatprep.mubr.f32.mxu0 %v45
  %228 = vmatmul.mubr.f32.gmra.mrb[0].mxu0 %v44
  %v229 = vpop.f32.mrb[0].mxu0
  %v230 = vadd.f32 0.0, %v229
  %v231 = vpop.f32.mrb[0].mxu0
  %232 = vmatprep.mubr.f32.mxu0 %v47
  %233 = vmatmul.mubr.f32.gmra.mrb[0].mxu0 %v46
  %v234 = vpop.f32.mrb[0].mxu0
  %v235 = vadd.f32 0.0, %v234
  %v236 = vpop.f32.mrb[0].mxu0
  %237 = vmatprep.mubr.f32.mxu0 %v49
  %238 = vmatmul.mubr.f32.gmra.mrb[0].mxu0 %v48
  %v239 = vpop.f32.mrb[0].mxu0
  %v240 = vadd.f32 0.0, %v239
  %v241 = vpop.f32.mrb[0].mxu0
  %242 = vmatprep.mubr.f32.mxu0 %v51
  %243 = vmatmul.mubr.f32.gmra.mrb[0].mxu0 %v50
  %v244 = vpop.f32.mrb[0].mxu0
  %v245 = vadd.f32 0.0, %v244
  %v246 = vpop.f32.mrb[0].mxu0
  %247 = vmatprep.mubr.f32.mxu0 %v53
  %248 = vmatmul.mubr.f32.gmra.mrb[0].mxu0 %v52
  %v249 = vpop.f32.mrb[0].mxu0
  %v250 = vadd.f32 0.0, %v249
  %v251 = vpop.f32.mrb[0].mxu0
  %252 = vmatprep.mubr.f32.mxu0 %v55
  %253 = vmatmul.mubr.f32.gmra.mrb[0].mxu0 %v54
  %v254 = vpop.f32.mrb[0].mxu0
  %v255 = vadd.f32 0.0, %v254
  %v256 = vpop.f32.mrb[0].mxu0
  %257 = vmatprep.mubr.f32.mxu0 %v57
  %258 = vmatmul.mubr.f32.gmra.mrb[0].mxu0 %v56
  %v259 = vpop.f32.mrb[0].mxu0
  %v260 = vadd.f32 0.0, %v259
  %v261 = vpop.f32.mrb[0].mxu0
  %262 = vmatprep.mubr.f32.mxu0 %v59
  %263 = vmatmul.mubr.f32.gmra.mrb[0].mxu0 %v58
  %v264 = vpop.f32.mrb[0].mxu0
  %v265 = vadd.f32 0.0, %v264
  %v266 = vpop.f32.mrb[0].mxu0
  %267 = vmatprep.mubr.f32.mxu0 %v61
  %268 = vmatmul.mubr.f32.gmra.mrb[0].mxu0 %v60
  %v269 = vpop.f32.mrb[0].mxu0
  %v270 = vadd.f32 0.0, %v269
  %v271 = vpop.f32.mrb[0].mxu0
  %272 = vmatprep.mubr.f32.mxu0 %v63
  %273 = vmatmul.mubr.f32.gmra.mrb[0].mxu0 %v62
  %v274 = vpop.f32.mrb[0].mxu0
  %v275 = vadd.f32 0.0, %v274
  %v276 = vpop.f32.mrb[0].mxu0
  %277 = vmatprep.mubr.f32.mxu0 %v65
  %278 = vmatmul.mubr.f32.gmra.mrb[0].mxu0 %v64
  %v279 = vpop.f32.mrb[0].mxu0
  %v280 = vadd.f32 0.0, %v279
  %v281 = vpop.f32.mrb[0].mxu0
  %282 = vmatprep.mubr.f32.mxu0 %v67
  %283 = vmatmul.mubr.f32.gmra.mrb[0].mxu0 %v66
  %v284 = vpop.f32.mrb[0].mxu0
  %v285 = vadd.f32 0.0, %v284
  %v286 = vpop.f32.mrb[0].mxu0
  %287 = vmatprep.mubr.f32.mxu0 %v69
  %288 = vmatmul.mubr.f32.gmra.mrb[0].mxu0 %v68
  %v289 = vpop.f32.mrb[0].mxu0
  %v290 = vadd.f32 0.0, %v289
  %v291 = vpop.f32.mrb[0].mxu0
  %292 = vmatprep.mubr.f32.mxu0 %v71
  %293 = vmatmul.mubr.f32.gmra.mrb[0].mxu0 %v70
  %v294 = vpop.f32.mrb[0].mxu0
  %v295 = vadd.f32 0.0, %v294
  %v296 = vpop.f32.mrb[0].mxu0
  %297 = vmatprep.mubr.f32.mxu0 %v73
  %298 = vmatmul.mubr.f32.gmra.mrb[0].mxu0 %v72
  %v299 = vpop.f32.mrb[0].mxu0
  %v300 = vadd.f32 0.0, %v299
  %v301 = vpop.f32.mrb[0].mxu0
  %302 = vmatprep.mubr.f32.mxu0 %v75
  %303 = vmatmul.mubr.f32.gmra.mrb[0].mxu0 %v74
  %v304 = vpop.f32.mrb[0].mxu0
  %v305 = vadd.f32 0.0, %v304
  %v306 = vpop.f32.mrb[0].mxu0
  %307 = vmatprep.mubr.f32.mxu0 %v77
  %308 = vmatmul.mubr.f32.gmra.mrb[0].mxu0 %v76
  %v309 = vpop.f32.mrb[0].mxu0
  %v310 = vadd.f32 0.0, %v309
  %v311 = vpop.f32.mrb[0].mxu0
  %312 = vmatprep.mubr.f32.mxu0 %v79
  %313 = vmatmul.mubr.f32.gmra.mrb[0].mxu0 %v78
  %v314 = vpop.f32.mrb[0].mxu0
  %v315 = vadd.f32 0.0, %v314
  %v316 = vpop.f32.mrb[0].mxu0
  %317 = vmatprep.mubr.f32.mxu0 %v81
  %318 = vmatmul.mubr.f32.gmra.mrb[0].mxu0 %v80
  %v319 = vpop.f32.mrb[0].mxu0
  %v320 = vadd.f32 0.0, %v319
  %v321 = vpop.f32.mrb[0].mxu0
  %322 = vmatprep.mubr.f32.mxu0 %v83
  %323 = vmatmul.mubr.f32.gmra.mrb[0].mxu0 %v82
  %v324 = vpop.f32.mrb[0].mxu0
  %v325 = vadd.f32 0.0, %v324
  %v326 = vpop.f32.mrb[0].mxu0
  %327 = vmatprep.mubr.f32.mxu0 %v85
  %328 = vmatmul.mubr.f32.gmra.mrb[0].mxu0 %v84
  %v329 = vpop.f32.mrb[0].mxu0
  %v330 = vadd.f32 0.0, %v329
  %v331 = vpop.f32.mrb[0].mxu0
  %332 = vmatprep.mubr.f32.mxu0 %v87
  %333 = vmatmul.mubr.f32.gmra.mrb[0].mxu0 %v86
  %v334 = vpop.f32.mrb[0].mxu0
  %v335 = vadd.f32 0.0, %v334
  %v336 = vpop.f32.mrb[0].mxu0
  %337 = vmatprep.mubr.f32.mxu0 %v89
  %338 = vmatmul.mubr.f32.gmra.mrb[0].mxu0 %v88
  %v339 = vpop.f32.mrb[0].mxu0
  %v340 = vadd.f32 0.0, %v339
  %v341 = vpop.f32.mrb[0].mxu0
  %342 = vmatprep.mubr.f32.mxu0 %v91
  %343 = vmatmul.mubr.f32.gmra.mrb[0].mxu0 %v90
  %v344 = vpop.f32.mrb[0].mxu0
  %v345 = vadd.f32 0.0, %v344
  %v346 = vpop.f32.mrb[0].mxu0
  %347 = vmatprep.mubr.f32.mxu0 %v93
  %348 = vmatmul.mubr.f32.gmra.mrb[0].mxu0 %v92
  %v349 = vpop.f32.mrb[0].mxu0
  %v350 = vadd.f32 0.0, %v349
  %v351 = vpop.f32.mrb[0].mxu0
  %352 = vmatprep.mubr.f32.mxu0 %v95
  %353 = vmatmul.mubr.f32.gmra.mrb[0].mxu0 %v94
  %v354 = vpop.f32.mrb[0].mxu0
  %v355 = vadd.f32 0.0, %v354
  %v356 = vpop.f32.mrb[0].mxu0
  %357 = vmatprep.mubr.f32.mxu0 %v97
  %358 = vmatmul.mubr.f32.gmra.mrb[0].mxu0 %v96
  %v359 = vpop.f32.mrb[0].mxu0
  %v360 = vadd.f32 0.0, %v359
  %v361 = vpop.f32.mrb[0].mxu0
  %362 = vmatprep.mubr.f32.mxu0 %v99
  %363 = vmatmul.mubr.f32.gmra.mrb[0].mxu0 %v98
  %v364 = vpop.f32.mrb[0].mxu0
  %v365 = vadd.f32 0.0, %v364
  %v366 = vpop.f32.mrb[0].mxu0
  %367 = vmatprep.mubr.f32.mxu0 %v101
  %368 = vmatmul.mubr.f32.gmra.mrb[0].mxu0 %v100
  %v369 = vpop.f32.mrb[0].mxu0
  %v370 = vadd.f32 0.0, %v369
  %v371 = vpop.f32.mrb[0].mxu0
  %372 = vmatprep.mubr.f32.mxu0 %v103
  %373 = vmatmul.mubr.f32.gmra.mrb[0].mxu0 %v102
  %v374 = vpop.f32.mrb[0].mxu0
  %v375 = vadd.f32 0.0, %v374
  %v376 = vpop.f32.mrb[0].mxu0
  %377 = vmatprep.mubr.f32.mxu0 %v105
  %378 = vmatmul.mubr.f32.gmra.mrb[0].mxu0 %v104
  %v379 = vpop.f32.mrb[0].mxu0
  %v380 = vadd.f32 0.0, %v379
  %v381 = vpop.f32.mrb[0].mxu0
  %382 = vdwg.mxu0
  %vm383 = vcmask 130048
  %384 = vst.msk [vmem:[#allocation2] sm:$0xff] %vm383, %v205
  %385 = vst.msk [vmem:[#allocation2 + $0x8] sm:$0xff] %vm383, %v210
  %386 = vst.msk [vmem:[#allocation2 + $0x10] sm:$0xff] %vm383, %v215
  %387 = vst.msk [vmem:[#allocation2 + $0x18] sm:$0xff] %vm383, %v220
  %388 = vst.msk [vmem:[#allocation2 + $0x20] sm:$0xff] %vm383, %v225
  %389 = vst.msk [vmem:[#allocation2 + $0x28] sm:$0xff] %vm383, %v230
  %390 = vst.msk [vmem:[#allocation2 + $0x30] sm:$0xff] %vm383, %v235
  %391 = vst.msk [vmem:[#allocation2 + $0x38] sm:$0xff] %vm383, %v240
  %392 = vst.msk [vmem:[#allocation2 + $0x40] sm:$0xff] %vm383, %v245
  %393 = vst.msk [vmem:[#allocation2 + $0x48] sm:$0xff] %vm383, %v250
  %394 = vst.msk [vmem:[#allocation2 + $0x50] sm:$0xff] %vm383, %v255
  %395 = vst.msk [vmem:[#allocation2 + $0x58] sm:$0xff] %vm383, %v260
  %396 = vst.msk [vmem:[#allocation2 + $0x60] sm:$0xff] %vm383, %v265
  %397 = vst.msk [vmem:[#allocation2 + $0x68] sm:$0xff] %vm383, %v270
  %398 = vst.msk [vmem:[#allocation2 + $0x70] sm:$0xff] %vm383, %v275
  %399 = vst.msk [vmem:[#allocation2 + $0x78] sm:$0xff] %vm383, %v280
  %400 = vst.msk [vmem:[#allocation2 + $0x80] sm:$0xff] %vm383, %v285
  %401 = vst.msk [vmem:[#allocation2 + $0x88] sm:$0xff] %vm383, %v290
  %402 = vst.msk [vmem:[#allocation2 + $0x90] sm:$0xff] %vm383, %v295
  %403 = vst.msk [vmem:[#allocation2 + $0x98] sm:$0xff] %vm383, %v300
  %404 = vst.msk [vmem:[#allocation2 + $0xa0] sm:$0xff] %vm383, %v305
  %405 = vst.msk [vmem:[#allocation2 + $0xa8] sm:$0xff] %vm383, %v310
  %406 = vst.msk [vmem:[#allocation2 + $0xb0] sm:$0xff] %vm383, %v315
  %407 = vst.msk [vmem:[#allocation2 + $0xb8] sm:$0xff] %vm383, %v320
  %408 = vst.msk [vmem:[#allocation2 + $0xc0] sm:$0xff] %vm383, %v325
  %409 = vst.msk [vmem:[#allocation2 + $0xc8] sm:$0xff] %vm383, %v330
  %410 = vst.msk [vmem:[#allocation2 + $0xd0] sm:$0xff] %vm383, %v335
  %411 = vst.msk [vmem:[#allocation2 + $0xd8] sm:$0xff] %vm383, %v340
  %412 = vst.msk [vmem:[#allocation2 + $0xe0] sm:$0xff] %vm383, %v345
  %413 = vst.msk [vmem:[#allocation2 + $0xe8] sm:$0xff] %vm383, %v350
  %414 = vst.msk [vmem:[#allocation2 + $0xf0] sm:$0xff] %vm383, %v355
  %415 = vst.msk [vmem:[#allocation2 + $0xf8] sm:$0xff] %vm383, %v360
  %416 = vst.msk [vmem:[#allocation2 + $0x100] sm:$0xff] %vm383, %v365
  %417 = vst.msk [vmem:[#allocation2 + $0x108] sm:$0xff] %vm383, %v370
  %418 = vst.msk [vmem:[#allocation2 + $0x110] sm:$0xff] %vm383, %v375
  %419 = vst.msk [vmem:[#allocation2 + $0x118] sm:$0xff] %vm383, %v380
  %v420 = vld [vmem:[#allocation2] sm:$0xff]
  %v421 = vld [vmem:[#allocation2 + $0x8] sm:$0xff]
  %v422 = vld [vmem:[#allocation2 + $0x10] sm:$0x3]
  %423 = vst.msk [vmem:[#allocation3] sm:$0xff] %vm383, %v420
  %424 = vst.msk [vmem:[#allocation3 + $0x10] sm:$0xff] %vm383, %v421
  %vm425 = vcmask 123904
  %426 = vst.msk [vmem:[#allocation3 + $0x20] sm:$0x3] %vm425, %v422
  %v427 = vld [vmem:[#allocation2 + $0x12] sm:$0xff]
  %v428 = vld [vmem:[#allocation2 + $0x1a] sm:$0xff]
  %v429 = vld [vmem:[#allocation2 + $0x22] sm:$0x3]
  %433 = vrot.lane.b32.xlu0 %v427, 16
  %v434 = vpop.permute.xlu0 %433
  %435 = vrot.lane.b32.xlu0 %v428, 16
  %v436 = vpop.permute.xlu0 %435
  %437 = vrot.lane.b32.xlu0 %v429, 16
  %v438 = vpop.permute.xlu0 %437
  %vm442 = vcmask 261248
  %443 = vst.msk [vmem:[#allocation3] sm:$0xff] %vm442, %v434
  %444 = vst.msk [vmem:[#allocation3 + $0x10] sm:$0xff] %vm442, %v436
  %vm445 = vcmask 255104
  %446 = vst.msk [vmem:[#allocation3 + $0x20] sm:$0x3] %vm445, %v438
  %v447 = vld [vmem:[#allocation2 + $0x24] sm:$0xff]
  %v448 = vld [vmem:[#allocation2 + $0x2c] sm:$0xff]
  %v449 = vld [vmem:[#allocation2 + $0x34] sm:$0x3]
  %453 = vrot.lane.b32.xlu0 %v447, 32
  %v454 = vpop.permute.xlu0 %453
  %455 = vrot.lane.b32.xlu0 %v448, 32
  %v456 = vpop.permute.xlu0 %455
  %457 = vrot.lane.b32.xlu0 %v449, 32
  %v458 = vpop.permute.xlu0 %457
  %vm462 = vcmask 392448
  %463 = vst.msk [vmem:[#allocation3] sm:$0xff] %vm462, %v454
  %464 = vst.msk [vmem:[#allocation3 + $0x10] sm:$0xff] %vm462, %v456
  %vm465 = vcmask 386304
  %466 = vst.msk [vmem:[#allocation3 + $0x20] sm:$0x3] %vm465, %v458
  %v467 = vld [vmem:[#allocation2 + $0x36] sm:$0xff]
  %v468 = vld [vmem:[#allocation2 + $0x3e] sm:$0xff]
  %v469 = vld [vmem:[#allocation2 + $0x46] sm:$0x3]
  %473 = vrot.lane.b32.xlu0 %v467, 48
  %v474 = vpop.permute.xlu0 %473
  %475 = vrot.lane.b32.xlu0 %v468, 48
  %v476 = vpop.permute.xlu0 %475
  %477 = vrot.lane.b32.xlu0 %v469, 48
  %v478 = vpop.permute.xlu0 %477
  %vm482 = vcmask 523648
  %483 = vst.msk [vmem:[#allocation3] sm:$0xff] %vm482, %v474
  %484 = vst.msk [vmem:[#allocation3 + $0x10] sm:$0xff] %vm482, %v476
  %vm485 = vcmask 517504
  %486 = vst.msk [vmem:[#allocation3 + $0x20] sm:$0x3] %vm485, %v478
  %v487 = vld [vmem:[#allocation2 + $0x48] sm:$0xff]
  %v488 = vld [vmem:[#allocation2 + $0x50] sm:$0xff]
  %v489 = vld [vmem:[#allocation2 + $0x58] sm:$0x3]
  %493 = vrot.lane.b32.xlu0 %v487, 64
  %v494 = vpop.permute.xlu0 %493
  %495 = vrot.lane.b32.xlu0 %v488, 64
  %v496 = vpop.permute.xlu0 %495
  %497 = vrot.lane.b32.xlu0 %v489, 64
  %v498 = vpop.permute.xlu0 %497
  %vm502 = vcmask 654848
  %503 = vst.msk [vmem:[#allocation3] sm:$0xff] %vm502, %v494
  %504 = vst.msk [vmem:[#allocation3 + $0x10] sm:$0xff] %vm502, %v496
  %vm505 = vcmask 648704
  %506 = vst.msk [vmem:[#allocation3 + $0x20] sm:$0x3] %vm505, %v498
  %v507 = vld [vmem:[#allocation2 + $0x5a] sm:$0xff]
  %v508 = vld [vmem:[#allocation2 + $0x62] sm:$0xff]
  %v509 = vld [vmem:[#allocation2 + $0x6a] sm:$0x3]
  %513 = vrot.lane.b32.xlu0 %v507, 80
  %v514 = vpop.permute.xlu0 %513
  %515 = vrot.lane.b32.xlu0 %v508, 80
  %v516 = vpop.permute.xlu0 %515
  %517 = vrot.lane.b32.xlu0 %v509, 80
  %v518 = vpop.permute.xlu0 %517
  %vm522 = vcmask 786048
  %523 = vst.msk [vmem:[#allocation3] sm:$0xff] %vm522, %v514
  %524 = vst.msk [vmem:[#allocation3 + $0x10] sm:$0xff] %vm522, %v516
  %vm525 = vcmask 779904
  %526 = vst.msk [vmem:[#allocation3 + $0x20] sm:$0x3] %vm525, %v518
  %v527 = vld [vmem:[#allocation2 + $0x6c] sm:$0xff]
  %v528 = vld [vmem:[#allocation2 + $0x74] sm:$0xff]
  %v529 = vld [vmem:[#allocation2 + $0x7c] sm:$0x3]
  %533 = vrot.lane.b32.xlu0 %v527, 96
  %v534 = vpop.permute.xlu0 %533
  %535 = vrot.lane.b32.xlu0 %v528, 96
  %v536 = vpop.permute.xlu0 %535
  %537 = vrot.lane.b32.xlu0 %v529, 96
  %v538 = vpop.permute.xlu0 %537
  %vm542 = vcmask 917248
  %543 = vst.msk [vmem:[#allocation3] sm:$0xff] %vm542, %v534
  %544 = vst.msk [vmem:[#allocation3 + $0x10] sm:$0xff] %vm542, %v536
  %vm545 = vcmask 911104
  %546 = vst.msk [vmem:[#allocation3 + $0x20] sm:$0x3] %vm545, %v538
  %v547 = vld [vmem:[#allocation2 + $0x7e] sm:$0xff]
  %v548 = vld [vmem:[#allocation2 + $0x86] sm:$0xff]
  %v549 = vld [vmem:[#allocation2 + $0x8e] sm:$0x3]
  %553 = vrot.lane.b32.xlu0 %v547, 112
  %v554 = vpop.permute.xlu0 %553
  %555 = vrot.lane.b32.xlu0 %v548, 112
  %v556 = vpop.permute.xlu0 %555
  %557 = vrot.lane.b32.xlu0 %v549, 112
  %v558 = vpop.permute.xlu0 %557
  %vm562 = vcmask 1048448
  %563 = vst.msk [vmem:[#allocation3] sm:$0xff] %vm562, %v554
  %564 = vst.msk [vmem:[#allocation3 + $0x10] sm:$0xff] %vm562, %v556
  %vm565 = vcmask 1042304
  %566 = vst.msk [vmem:[#allocation3 + $0x20] sm:$0x3] %vm565, %v558
  %v567 = vld [vmem:[#allocation2 + $0x90] sm:$0xff]
  %v568 = vld [vmem:[#allocation2 + $0x98] sm:$0xff]
  %v569 = vld [vmem:[#allocation2 + $0xa0] sm:$0x3]
  %570 = vst.msk [vmem:[#allocation3 + $0x8] sm:$0xff] %vm383, %v567
  %571 = vst.msk [vmem:[#allocation3 + $0x18] sm:$0xff] %vm383, %v568
  %572 = vst.msk [vmem:[#allocation3 + $0x28] sm:$0x3] %vm425, %v569
  %v573 = vld [vmem:[#allocation2 + $0xa2] sm:$0xff]
  %v574 = vld [vmem:[#allocation2 + $0xaa] sm:$0xff]
  %v575 = vld [vmem:[#allocation2 + $0xb2] sm:$0x3]
  %579 = vrot.lane.b32.xlu0 %v573, 16
  %v580 = vpop.permute.xlu0 %579
  %581 = vrot.lane.b32.xlu0 %v574, 16
  %v582 = vpop.permute.xlu0 %581
  %583 = vrot.lane.b32.xlu0 %v575, 16
  %v584 = vpop.permute.xlu0 %583
  %588 = vst.msk [vmem:[#allocation3 + $0x8] sm:$0xff] %vm442, %v580
  %589 = vst.msk [vmem:[#allocation3 + $0x18] sm:$0xff] %vm442, %v582
  %590 = vst.msk [vmem:[#allocation3 + $0x28] sm:$0x3] %vm445, %v584
  %v591 = vld [vmem:[#allocation2 + $0xb4] sm:$0xff]
  %v592 = vld [vmem:[#allocation2 + $0xbc] sm:$0xff]
  %v593 = vld [vmem:[#allocation2 + $0xc4] sm:$0x3]
  %597 = vrot.lane.b32.xlu0 %v591, 32
  %v598 = vpop.permute.xlu0 %597
  %599 = vrot.lane.b32.xlu0 %v592, 32
  %v600 = vpop.permute.xlu0 %599
  %601 = vrot.lane.b32.xlu0 %v593, 32
  %v602 = vpop.permute.xlu0 %601
  %606 = vst.msk [vmem:[#allocation3 + $0x8] sm:$0xff] %vm462, %v598
  %607 = vst.msk [vmem:[#allocation3 + $0x18] sm:$0xff] %vm462, %v600
  %608 = vst.msk [vmem:[#allocation3 + $0x28] sm:$0x3] %vm465, %v602
  %v609 = vld [vmem:[#allocation2 + $0xc6] sm:$0xff]
  %v610 = vld [vmem:[#allocation2 + $0xce] sm:$0xff]
  %v611 = vld [vmem:[#allocation2 + $0xd6] sm:$0x3]
  %615 = vrot.lane.b32.xlu0 %v609, 48
  %v616 = vpop.permute.xlu0 %615
  %617 = vrot.lane.b32.xlu0 %v610, 48
  %v618 = vpop.permute.xlu0 %617
  %619 = vrot.lane.b32.xlu0 %v611, 48
  %v620 = vpop.permute.xlu0 %619
  %624 = vst.msk [vmem:[#allocation3 + $0x8] sm:$0xff] %vm482, %v616
  %625 = vst.msk [vmem:[#allocation3 + $0x18] sm:$0xff] %vm482, %v618
  %626 = vst.msk [vmem:[#allocation3 + $0x28] sm:$0x3] %vm485, %v620
  %v627 = vld [vmem:[#allocation2 + $0xd8] sm:$0xff]
  %v628 = vld [vmem:[#allocation2 + $0xe0] sm:$0xff]
  %v629 = vld [vmem:[#allocation2 + $0xe8] sm:$0x3]
  %633 = vrot.lane.b32.xlu0 %v627, 64
  %v634 = vpop.permute.xlu0 %633
  %635 = vrot.lane.b32.xlu0 %v628, 64
  %v636 = vpop.permute.xlu0 %635
  %637 = vrot.lane.b32.xlu0 %v629, 64
  %v638 = vpop.permute.xlu0 %637
  %642 = vst.msk [vmem:[#allocation3 + $0x8] sm:$0xff] %vm502, %v634
  %643 = vst.msk [vmem:[#allocation3 + $0x18] sm:$0xff] %vm502, %v636
  %644 = vst.msk [vmem:[#allocation3 + $0x28] sm:$0x3] %vm505, %v638
  %v645 = vld [vmem:[#allocation2 + $0xea] sm:$0xff]
  %v646 = vld [vmem:[#allocation2 + $0xf2] sm:$0xff]
  %v647 = vld [vmem:[#allocation2 + $0xfa] sm:$0x3]
  %651 = vrot.lane.b32.xlu0 %v645, 80
  %v652 = vpop.permute.xlu0 %651
  %653 = vrot.lane.b32.xlu0 %v646, 80
  %v654 = vpop.permute.xlu0 %653
  %655 = vrot.lane.b32.xlu0 %v647, 80
  %v656 = vpop.permute.xlu0 %655
  %660 = vst.msk [vmem:[#allocation3 + $0x8] sm:$0xff] %vm522, %v652
  %661 = vst.msk [vmem:[#allocation3 + $0x18] sm:$0xff] %vm522, %v654
  %662 = vst.msk [vmem:[#allocation3 + $0x28] sm:$0x3] %vm525, %v656
  %v663 = vld [vmem:[#allocation2 + $0xfc] sm:$0xff]
  %v664 = vld [vmem:[#allocation2 + $0x104] sm:$0xff]
  %v665 = vld [vmem:[#allocation2 + $0x10c] sm:$0x3]
  %669 = vrot.lane.b32.xlu0 %v663, 96
  %v670 = vpop.permute.xlu0 %669
  %671 = vrot.lane.b32.xlu0 %v664, 96
  %v672 = vpop.permute.xlu0 %671
  %673 = vrot.lane.b32.xlu0 %v665, 96
  %v674 = vpop.permute.xlu0 %673
  %678 = vst.msk [vmem:[#allocation3 + $0x8] sm:$0xff] %vm542, %v670
  %679 = vst.msk [vmem:[#allocation3 + $0x18] sm:$0xff] %vm542, %v672
  %680 = vst.msk [vmem:[#allocation3 + $0x28] sm:$0x3] %vm545, %v674
  %v681 = vld [vmem:[#allocation2 + $0x10e] sm:$0xff]
  %v682 = vld [vmem:[#allocation2 + $0x116] sm:$0xff]
  %v683 = vld [vmem:[#allocation2 + $0x11e] sm:$0x3]
  %687 = vrot.lane.b32.xlu0 %v681, 112
  %v688 = vpop.permute.xlu0 %687
  %689 = vrot.lane.b32.xlu0 %v682, 112
  %v690 = vpop.permute.xlu0 %689
  %691 = vrot.lane.b32.xlu0 %v683, 112
  %v692 = vpop.permute.xlu0 %691
  %696 = vst.msk [vmem:[#allocation3 + $0x8] sm:$0xff] %vm562, %v688
  %697 = vst.msk [vmem:[#allocation3 + $0x18] sm:$0xff] %vm562, %v690
  %698 = vst.msk [vmem:[#allocation3 + $0x28] sm:$0x3] %vm565, %v692
  %v699 = vld [vmem:[#allocation3] sm:$0xff]
  %v700 = vld [vmem:[#allocation3 + $0x8] sm:$0xff]
  %v701 = vld [vmem:[#allocation3 + $0x10] sm:$0xff]
  %v702 = vld [vmem:[#allocation3 + $0x18] sm:$0xff]
  %v703 = vld [vmem:[#allocation3 + $0x20] sm:$0x3]
  %v704 = vld [vmem:[#allocation3 + $0x28] sm:$0x3]
  %v705 = vld [vmem:[%s2] sm:$0x3]
  %v707 = vlaneseq
  %v708 = vshrl.u32 %v707, 7
  %v709 = vsub.s32 0, %v708
  %v710 = vrot.slane %v705, %v709
  %v711 = vlaneseq
  %v712 = vshrl.u32 %v711, 7
  %v713 = vsub.s32 1, %v712
  %v714 = vrot.slane %v705, %v713
  %v717 = vadd.f32 %v699, %v710
  %v718 = vadd.f32 %v700, %v714
  %v719 = vadd.f32 %v701, %v710
  %v720 = vadd.f32 %v702, %v714
  %v721 = vadd.f32 %v703, %v710
  %v722 = vadd.f32 %v704, %v714
  %v723 = vmax.f32 %v717, 0.0
  %v724 = vmax.f32 %v718, 0.0
  %v725 = vmax.f32 %v719, 0.0
  %v726 = vmax.f32 %v720, 0.0
  %v727 = vmax.f32 %v721, 0.0
  %v728 = vmax.f32 %v722, 0.0
  %v729 = vld [vmem:[%s3] sm:$0xff]
  %v730 = vld [vmem:[%s3 + $0x8] sm:$0xff]
  %v731 = vld [vmem:[%s3 + $0x10] sm:$0xff]
  %v732 = vld [vmem:[%s3 + $0x18] sm:$0xff]
  %v733 = vld [vmem:[%s3 + $0x20] sm:$0xff]
  %v734 = vld [vmem:[%s3 + $0x28] sm:$0xff]
  %v735 = vld [vmem:[%s3 + $0x30] sm:$0xff]
  %v736 = vld [vmem:[%s3 + $0x38] sm:$0xff]
  %v737 = vld [vmem:[%s3 + $0x40] sm:$0xff]
  %v738 = vld [vmem:[%s3 + $0x48] sm:$0xff]
  %v739 = vld [vmem:[%s3 + $0x50] sm:$0xff]
  %v740 = vld [vmem:[%s3 + $0x58] sm:$0xff]
  %v741 = vld [vmem:[%s3 + $0x60] sm:$0xff]
  %v742 = vld [vmem:[%s3 + $0x68] sm:$0xff]
  %v743 = vld [vmem:[%s3 + $0x70] sm:$0xff]
  %v744 = vld [vmem:[%s3 + $0x78] sm:$0xff]
  %v745 = vld [vmem:[%s3 + $0x80] sm:$0xff]
  %v746 = vld [vmem:[%s3 + $0x88] sm:$0xff]
  %v747 = vld [vmem:[%s3 + $0x90] sm:$0xff]
  %v748 = vld [vmem:[%s3 + $0x98] sm:$0xff]
  %v749 = vld [vmem:[%s3 + $0xa0] sm:$0xff]
  %v750 = vld [vmem:[%s3 + $0xa8] sm:$0xff]
  %v751 = vld [vmem:[%s3 + $0xb0] sm:$0xff]
  %v752 = vld [vmem:[%s3 + $0xb8] sm:$0xff]
  %v753 = vld [vmem:[%s3 + $0xc0] sm:$0xff]
  %v754 = vld [vmem:[%s3 + $0xc8] sm:$0xff]
  %v755 = vld [vmem:[%s3 + $0xd0] sm:$0xff]
  %v756 = vld [vmem:[%s3 + $0xd8] sm:$0xff]
  %v757 = vld [vmem:[%s3 + $0xe0] sm:$0xff]
  %v758 = vld [vmem:[%s3 + $0xe8] sm:$0xff]
  %v759 = vld [vmem:[%s3 + $0xf0] sm:$0xff]
  %v760 = vld [vmem:[%s3 + $0xf8] sm:$0xff]
  %v761 = vld [vmem:[%s4] sm:$0x1]
  %v763 = vlaneseq
  %v764 = vshrl.u32 %v763, 7
  %v765 = vsub.s32 0, %v764
  %v766 = vrot.slane %v761, %v765
  %768 = vmatprep.subr.mxu0 0.0
  %769 = vmatpush1.msra.mxu0 %v729
  %770 = vmatprep.subr.mxu0 0.0
  %771 = vmatpush1.msra.mxu0 %v730
  %772 = vmatprep.subr.mxu0 0.0
  %773 = vmatpush1.msra.mxu0 %v731
  %774 = vmatprep.subr.mxu0 0.0
  %775 = vmatpush1.msra.mxu0 %v732
  %776 = vmatprep.subr.mxu0 0.0
  %777 = vmatpush1.msra.mxu0 %v733
  %778 = vmatprep.subr.mxu0 0.0
  %779 = vmatpush1.msra.mxu0 %v734
  %780 = vmatprep.subr.mxu0 0.0
  %781 = vmatpush1.msra.mxu0 %v735
  %782 = vmatprep.subr.mxu0 0.0
  %783 = vmatpush1.msra.mxu0 %v736
  %784 = vmatprep.subr.mxu0 0.0
  %785 = vmatpush1.msra.mxu0 %v737
  %786 = vmatprep.subr.mxu0 0.0
  %787 = vmatpush1.msra.mxu0 %v738
  %788 = vmatprep.subr.mxu0 0.0
  %789 = vmatpush1.msra.mxu0 %v739
  %790 = vmatprep.subr.mxu0 0.0
  %791 = vmatpush1.msra.mxu0 %v740
  %792 = vmatprep.subr.mxu0 0.0
  %793 = vmatpush1.msra.mxu0 %v741
  %794 = vmatprep.subr.mxu0 0.0
  %795 = vmatpush1.msra.mxu0 %v742
  %796 = vmatprep.subr.mxu0 0.0
  %797 = vmatpush1.msra.mxu0 %v743
  %798 = vmatprep.subr.mxu0 0.0
  %799 = vmatpush1.msra.mxu0 %v744
  %800 = vmatprep.subr.mxu0 0.0
  %801 = vmatpush1.msra.mxu0 %v745
  %802 = vmatprep.subr.mxu0 0.0
  %803 = vmatpush1.msra.mxu0 %v746
  %804 = vmatprep.subr.mxu0 0.0
  %805 = vmatpush1.msra.mxu0 %v747
  %806 = vmatprep.subr.mxu0 0.0
  %807 = vmatpush1.msra.mxu0 %v748
  %808 = vmatprep.subr.mxu0 0.0
  %809 = vmatpush1.msra.mxu0 %v749
  %810 = vmatprep.subr.mxu0 0.0
  %811 = vmatpush1.msra.mxu0 %v750
  %812 = vmatprep.subr.mxu0 0.0
  %813 = vmatpush1.msra.mxu0 %v751
  %814 = vmatprep.subr.mxu0 0.0
  %815 = vmatpush1.msra.mxu0 %v752
  %816 = vmatprep.subr.mxu0 0.0
  %817 = vmatpush1.msra.mxu0 %v753
  %818 = vmatprep.subr.mxu0 0.0
  %819 = vmatpush1.msra.mxu0 %v754
  %820 = vmatprep.subr.mxu0 0.0
  %821 = vmatpush1.msra.mxu0 %v755
  %822 = vmatprep.subr.mxu0 0.0
  %823 = vmatpush1.msra.mxu0 %v756
  %824 = vmatprep.subr.mxu0 0.0
  %825 = vmatpush1.msra.mxu0 %v757
  %826 = vmatprep.subr.mxu0 0.0
  %827 = vmatpush1.msra.mxu0 %v758
  %828 = vmatprep.subr.mxu0 0.0
  %829 = vmatpush1.msra.mxu0 %v759
  %830 = vmatprep.subr.mxu0 0.0
  %831 = vmatpush1.msra.mxu0 %v760
  %832 = vmatprep.mubr.f32.mxu0 %v724
  %833 = vmatmul.mubr.f32.gmra.mrb[0].mxu0 %v723
  %v834 = vpop.f32.mrb[0].mxu0
  %v835 = vadd.f32 %v766, %v834
  %v836 = vpop.f32.mrb[0].mxu0
  %837 = vmatprep.mubr.f32.mxu0 %v726
  %838 = vmatmul.mubr.f32.gmra.mrb[0].mxu0 %v725
  %v839 = vpop.f32.mrb[0].mxu0
  %v840 = vadd.f32 %v766, %v839
  %v841 = vpop.f32.mrb[0].mxu0
  %842 = vmatprep.mubr.f32.mxu0 %v728
  %843 = vmatmul.mubr.f32.gmra.mrb[0].mxu0 %v727
  %v844 = vpop.f32.mrb[0].mxu0
  %v845 = vadd.f32 %v766, %v844
  %v846 = vpop.f32.mrb[0].mxu0
  %847 = vdwg.mxu0
  %v848 = vmax.f32 %v835, 0.0
  %v849 = vmax.f32 %v840, 0.0
  %v850 = vmax.f32 %v845, 0.0
  %vm851 = vcmask 254976
  %852 = vst.msk [vmem:[#allocation4] sm:$0x3] %vm851, %v848
  %v855 = vunpack.c.l.s4 1983009808
  %v856 = vunpack.c.0.s8 %v855
  %v857 = vlaneseq
  %v858 = vshrl.u32 %v857, 7
  %v859 = vsub.s32 %v856, %v858
  %v860 = vrot.slane %v848, %v859
  %v861 = vcombine.high %v860, %v860
  %862 = vrot.lane.b32.xlu0 %v861, 32
  %v863 = vpop.permute.xlu0 %862
  %vm865 = vcmask 517376
  %866 = vst.msk [vmem:[#allocation4] sm:$0x3] %vm865, %v863
  %v867 = vcombine.high %v848, %v848
  %v869 = vunpack.c.l.s4 1983009808
  %v870 = vunpack.c.0.s8 %v869
  %v871 = vlaneseq
  %v872 = vshrl.u32 %v871, 7
  %v873 = vsub.s32 %v870, %v872
  %v874 = vrot.slane %v867, %v873
  %875 = vrot.lane.b32.xlu0 %v874, 64
  %v876 = vpop.permute.xlu0 %875
  %vm878 = vcmask 779776
  %879 = vst.msk [vmem:[#allocation4] sm:$0x3] %vm878, %v876
  %v880 = vcombine.high %v874, %v874
  %881 = vrot.lane.b32.xlu0 %v880, 96
  %v882 = vpop.permute.xlu0 %881
  %vm884 = vcmask 1042176
  %885 = vst.msk [vmem:[#allocation4] sm:$0x3] %vm884, %v882
  %886 = vst.msk [vmem:[#allocation4 + $0x2] sm:$0x3] %vm851, %v849
  %v889 = vunpack.c.l.s4 1983009808
  %v890 = vunpack.c.0.s8 %v889
  %v891 = vlaneseq
  %v892 = vshrl.u32 %v891, 7
  %v893 = vsub.s32 %v890, %v892
  %v894 = vrot.slane %v849, %v893
  %v895 = vcombine.high %v894, %v894
  %896 = vrot.lane.b32.xlu0 %v895, 32
  %v897 = vpop.permute.xlu0 %896
  %899 = vst.msk [vmem:[#allocation4 + $0x2] sm:$0x3] %vm865, %v897
  %v900 = vcombine.high %v849, %v849
  %v902 = vunpack.c.l.s4 1983009808
  %v903 = vunpack.c.0.s8 %v902
  %v904 = vlaneseq
  %v905 = vshrl.u32 %v904, 7
  %v906 = vsub.s32 %v903, %v905
  %v907 = vrot.slane %v900, %v906
  %908 = vrot.lane.b32.xlu0 %v907, 64
  %v909 = vpop.permute.xlu0 %908
  %911 = vst.msk [vmem:[#allocation4 + $0x2] sm:$0x3] %vm878, %v909
  %v912 = vcombine.high %v907, %v907
  %913 = vrot.lane.b32.xlu0 %v912, 96
  %v914 = vpop.permute.xlu0 %913
  %916 = vst.msk [vmem:[#allocation4 + $0x2] sm:$0x3] %vm884, %v914
  %917 = vst.msk [vmem:[#allocation4 + $0x4] sm:$0x3] %vm851, %v850
  %v918 = vld [vmem:[#allocation4] sm:$0x3f]
  %v919 = vld [vmem:[%s5] sm:$0xff]
  %v920 = vld [vmem:[%s5 + $0x8] sm:$0xff]
  %v921 = vld [vmem:[%s5 + $0x10] sm:$0xff]
  %v922 = vld [vmem:[%s5 + $0x18] sm:$0xff]
  %v923 = vld [vmem:[%s5 + $0x20] sm:$0xff]
  %v924 = vld [vmem:[%s5 + $0x28] sm:$0xff]
  %v925 = vld [vmem:[%s5 + $0x30] sm:$0xff]
  %v926 = vld [vmem:[%s5 + $0x38] sm:$0xff]
  %v927 = vld [vmem:[%s5 + $0x40] sm:$0xff]
  %v928 = vld [vmem:[%s5 + $0x48] sm:$0xff]
  %v929 = vld [vmem:[%s5 + $0x50] sm:$0xff]
  %v930 = vld [vmem:[%s5 + $0x58] sm:$0xff]
  %v931 = vld [vmem:[%s5 + $0x60] sm:$0xff]
  %v932 = vld [vmem:[%s5 + $0x68] sm:$0xff]
  %v933 = vld [vmem:[%s5 + $0x70] sm:$0xff]
  %v934 = vld [vmem:[%s5 + $0x78] sm:$0xff]
  %v935 = vld [vmem:[%s5 + $0x80] sm:$0xff]
  %v936 = vld [vmem:[%s5 + $0x88] sm:$0xff]
  %v937 = vld [vmem:[%s5 + $0x90] sm:$0xff]
  %v938 = vld [vmem:[%s5 + $0x98] sm:$0xff]
  %v939 = vld [vmem:[%s5 + $0xa0] sm:$0xff]
  %v940 = vld [vmem:[%s5 + $0xa8] sm:$0xff]
  %v941 = vld [vmem:[%s5 + $0xb0] sm:$0xff]
  %v942 = vld [vmem:[%s5 + $0xb8] sm:$0xff]
  %v943 = vld [vmem:[%s5 + $0xc0] sm:$0xff]
  %v944 = vld [vmem:[%s5 + $0xc8] sm:$0xff]
  %v945 = vld [vmem:[%s5 + $0xd0] sm:$0xff]
  %v946 = vld [vmem:[%s5 + $0xd8] sm:$0xff]
  %v947 = vld [vmem:[%s5 + $0xe0] sm:$0xff]
  %v948 = vld [vmem:[%s5 + $0xe8] sm:$0xff]
  %v949 = vld [vmem:[%s5 + $0xf0] sm:$0xff]
  %v950 = vld [vmem:[%s5 + $0xf8] sm:$0xff]
  %v951 = vld [vmem:[%s5 + $0x100] sm:$0xff]
  %v952 = vld [vmem:[%s5 + $0x108] sm:$0xff]
  %v953 = vld [vmem:[%s5 + $0x110] sm:$0xff]
  %v954 = vld [vmem:[%s5 + $0x118] sm:$0xff]
  %v955 = vld [vmem:[%s6] sm:$0x1]
  %v957 = vlaneseq
  %v958 = vshrl.u32 %v957, 7
  %v959 = vsub.s32 0, %v958
  %v960 = vrot.slane %v955, %v959
  %v963 = vcombine.high %v918, %v918
  %v965 = vunpack.c.l.s4 1983009808
  %v966 = vunpack.c.0.s8 %v965
  %v967 = vlaneseq
  %v968 = vshrl.u32 %v967, 7
  %v969 = vsub.s32 %v966, %v968
  %v970 = vrot.slane %v918, %v969
  %v972 = vunpack.c.l.s4 1983009808
  %v973 = vunpack.c.0.s8 %v972
  %v974 = vlaneseq
  %v975 = vshrl.u32 %v974, 7
  %v976 = vsub.s32 %v973, %v975
  %v977 = vrot.slane %v963, %v976
  %v978 = vcombine.high %v970, %v970
  %vm981 = vcmask 261120
  %v982 = vsel %vm981, %v977, 0
  %984 = vmatprep.subr.mxu0 0.0
  %985 = vmatpush1.msra.mxu0 %v919
  %986 = vmatprep.subr.mxu0 0.0
  %987 = vmatpush1.msra.mxu0 %v920
  %988 = vmatprep.subr.mxu0 0.0
  %989 = vmatpush1.msra.mxu0 %v921
  %990 = vmatprep.subr.mxu0 0.0
  %991 = vmatpush1.msra.mxu0 %v922
  %992 = vmatprep.subr.mxu0 0.0
  %993 = vmatpush1.msra.mxu0 %v923
  %994 = vmatprep.subr.mxu0 0.0
  %995 = vmatpush1.msra.mxu0 %v924
  %996 = vmatprep.subr.mxu0 0.0
  %997 = vmatpush1.msra.mxu0 %v925
  %998 = vmatprep.subr.mxu0 0.0
  %999 = vmatpush1.msra.mxu0 %v926
  %1000 = vmatprep.subr.mxu0 0.0
  %1001 = vmatpush1.msra.mxu0 %v927
  %1002 = vmatprep.subr.mxu0 0.0
  %1003 = vmatpush1.msra.mxu0 %v928
  %1004 = vmatprep.subr.mxu0 0.0
  %1005 = vmatpush1.msra.mxu0 %v929
  %1006 = vmatprep.subr.mxu0 0.0
  %1007 = vmatpush1.msra.mxu0 %v930
  %1008 = vmatprep.subr.mxu0 0.0
  %1009 = vmatpush1.msra.mxu0 %v931
  %1010 = vmatprep.subr.mxu0 0.0
  %1011 = vmatpush1.msra.mxu0 %v932
  %1012 = vmatprep.subr.mxu0 0.0
  %1013 = vmatpush1.msra.mxu0 %v933
  %1014 = vmatprep.subr.mxu0 0.0
  %1015 = vmatpush1.msra.mxu0 %v934
  %1016 = vmatprep.subr.mxu0 0.0
  %1017 = vmatpush1.msra.mxu0 %v935
  %1018 = vmatprep.subr.mxu0 0.0
  %1019 = vmatpush1.msra.mxu0 %v936
  %1020 = vmatprep.subr.mxu0 0.0
  %1021 = vmatpush1.msra.mxu0 %v937
  %1022 = vmatprep.subr.mxu0 0.0
  %1023 = vmatpush1.msra.mxu0 %v938
  %1024 = vmatprep.subr.mxu0 0.0
  %1025 = vmatpush1.msra.mxu0 %v939
  %1026 = vmatprep.subr.mxu0 0.0
  %1027 = vmatpush1.msra.mxu0 %v940
  %1028 = vmatprep.subr.mxu0 0.0
  %1029 = vmatpush1.msra.mxu0 %v941
  %1030 = vmatprep.subr.mxu0 0.0
  %1031 = vmatpush1.msra.mxu0 %v942
  %1032 = vmatprep.subr.mxu0 0.0
  %1033 = vmatpush1.msra.mxu0 %v943
  %1034 = vmatprep.subr.mxu0 0.0
  %1035 = vmatpush1.msra.mxu0 %v944
  %1036 = vmatprep.subr.mxu0 0.0
  %1037 = vmatpush1.msra.mxu0 %v945
  %1038 = vmatprep.subr.mxu0 0.0
  %1039 = vmatpush1.msra.mxu0 %v946
  %1040 = vmatprep.subr.mxu0 0.0
  %1041 = vmatpush1.msra.mxu0 %v947
  %1042 = vmatprep.subr.mxu0 0.0
  %1043 = vmatpush1.msra.mxu0 %v948
  %1044 = vmatprep.subr.mxu0 0.0
  %1045 = vmatpush1.msra.mxu0 %v949
  %1046 = vmatprep.subr.mxu0 0.0
  %1047 = vmatpush1.msra.mxu0 %v950
  %1048 = vmatprep.mubr.f32.mxu0 %v978
  %1049 = vmatmul.mubr.f32.gmra.mrb[0].mxu0 %v970
  %v1050 = vpop.f32.mrb[0].mxu0
  %v1051 = vadd.f32 %v960, %v1050
  %v1052 = vpop.f32.mrb[0].mxu0
  %1053 = vdwg.mxu0
  %1054 = vmatprep.subr.mxu0 0.0
  %1055 = vmatpush1.msra.mxu0 %v951
  %1056 = vmatprep.subr.mxu0 0.0
  %1057 = vmatpush1.msra.mxu0 %v952
  %1058 = vmatprep.subr.mxu0 0.0
  %1059 = vmatpush1.msra.mxu0 %v953
  %1060 = vmatprep.subr.mxu0 0.0
  %1061 = vmatpush1.msra.mxu0 %v954
  %1062 = vmatprep.subr.mxu0 0.0
  %1063 = vmatpush1.msra.mxu0 0.0
  %1064 = vmatprep.subr.mxu0 0.0
  %1065 = vmatpush1.msra.mxu0 0.0
  %1066 = vmatprep.subr.mxu0 0.0
  %1067 = vmatpush1.msra.mxu0 0.0
  %1068 = vmatprep.subr.mxu0 0.0
  %1069 = vmatpush1.msra.mxu0 0.0
  %1070 = vmatprep.subr.mxu0 0.0
  %1071 = vmatpush1.msra.mxu0 0.0
  %1072 = vmatprep.subr.mxu0 0.0
  %1073 = vmatpush1.msra.mxu0 0.0
  %1074 = vmatprep.subr.mxu0 0.0
  %1075 = vmatpush1.msra.mxu0 0.0
  %1076 = vmatprep.subr.mxu0 0.0
  %1077 = vmatpush1.msra.mxu0 0.0
  %1078 = vmatprep.subr.mxu0 0.0
  %1079 = vmatpush1.msra.mxu0 0.0
  %1080 = vmatprep.subr.mxu0 0.0
  %1081 = vmatpush1.msra.mxu0 0.0
  %1082 = vmatprep.subr.mxu0 0.0
  %1083 = vmatpush1.msra.mxu0 0.0
  %1084 = vmatprep.subr.mxu0 0.0
  %1085 = vmatpush1.msra.mxu0 0.0
  %1086 = vmatprep.subr.mxu0 0.0
  %1087 = vmatpush1.msra.mxu0 0.0
  %1088 = vmatprep.subr.mxu0 0.0
  %1089 = vmatpush1.msra.mxu0 0.0
  %1090 = vmatprep.subr.mxu0 0.0
  %1091 = vmatpush1.msra.mxu0 0.0
  %1092 = vmatprep.subr.mxu0 0.0
  %1093 = vmatpush1.msra.mxu0 0.0
  %1094 = vmatprep.subr.mxu0 0.0
  %1095 = vmatpush1.msra.mxu0 0.0
  %1096 = vmatprep.subr.mxu0 0.0
  %1097 = vmatpush1.msra.mxu0 0.0
  %1098 = vmatprep.subr.mxu0 0.0
  %1099 = vmatpush1.msra.mxu0 0.0
  %1100 = vmatprep.subr.mxu0 0.0
  %1101 = vmatpush1.msra.mxu0 0.0
  %1102 = vmatprep.subr.mxu0 0.0
  %1103 = vmatpush1.msra.mxu0 0.0
  %1104 = vmatprep.subr.mxu0 0.0
  %1105 = vmatpush1.msra.mxu0 0.0
  %1106 = vmatprep.subr.mxu0 0.0
  %1107 = vmatpush1.msra.mxu0 0.0
  %1108 = vmatprep.subr.mxu0 0.0
  %1109 = vmatpush1.msra.mxu0 0.0
  %1110 = vmatprep.subr.mxu0 0.0
  %1111 = vmatpush1.msra.mxu0 0.0
  %1112 = vmatprep.subr.mxu0 0.0
  %1113 = vmatpush1.msra.mxu0 0.0
  %1114 = vmatprep.subr.mxu0 0.0
  %1115 = vmatpush1.msra.mxu0 0.0
  %1116 = vmatprep.subr.mxu0 0.0
  %1117 = vmatpush1.msra.mxu0 0.0
  %1118 = vmatprep.mubr.f32.mxu0 0.0
  %1119 = vmatmul.mubr.f32.gmra.mrb[0].mxu0 %v982
  %v1120 = vpop.f32.mrb[0].mxu0
  %v1121 = vadd.f32 %v1051, %v1120
  %v1122 = vpop.f32.mrb[0].mxu0
  %1123 = vdwg.mxu0
  %v1124 = vmax.f32 %v1121, 0.0
  %v1125 = vld [vmem:[%s7] sm:$0xff]
  %v1126 = vld [vmem:[%s7 + $0x8] sm:$0xff]
  %v1127 = vld [vmem:[%s7 + $0x10] sm:$0xff]
  %v1128 = vld [vmem:[%s7 + $0x18] sm:$0xff]
  %v1129 = vld [vmem:[%s7 + $0x20] sm:$0xff]
  %v1130 = vld [vmem:[%s7 + $0x28] sm:$0xff]
  %v1131 = vld [vmem:[%s7 + $0x30] sm:$0xff]
  %v1132 = vld [vmem:[%s7 + $0x38] sm:$0xff]
  %v1133 = vld [vmem:[#allocation5] sm:$0x1]
  %v1135 = vlaneseq
  %v1136 = vshrl.u32 %v1135, 7
  %v1137 = vsub.s32 0, %v1136
  %v1138 = vrot.slane %v1133, %v1137
  %vm1140 = vcmask 523264
  %v1142 = vsel %vm1140, %v1124, 0
  %1144 = vmatprep.subr.mxu0 0.0
  %1145 = vmatpush1.msra.mxu0 %v1125
  %1146 = vmatprep.subr.mxu0 0.0
  %1147 = vmatpush1.msra.mxu0 %v1126
  %1148 = vmatprep.subr.mxu0 0.0
  %1149 = vmatpush1.msra.mxu0 %v1127
  %1150 = vmatprep.subr.mxu0 0.0
  %1151 = vmatpush1.msra.mxu0 %v1128
  %1152 = vmatprep.subr.mxu0 0.0
  %1153 = vmatpush1.msra.mxu0 %v1129
  %1154 = vmatprep.subr.mxu0 0.0
  %1155 = vmatpush1.msra.mxu0 %v1130
  %1156 = vmatprep.subr.mxu0 0.0
  %1157 = vmatpush1.msra.mxu0 %v1131
  %1158 = vmatprep.subr.mxu0 0.0
  %1159 = vmatpush1.msra.mxu0 %v1132
  %1160 = vmatprep.subr.mxu0 0.0
  %1161 = vmatpush1.msra.mxu0 0.0
  %1162 = vmatprep.subr.mxu0 0.0
  %1163 = vmatpush1.msra.mxu0 0.0
  %1164 = vmatprep.subr.mxu0 0.0
  %1165 = vmatpush1.msra.mxu0 0.0
  %1166 = vmatprep.subr.mxu0 0.0
  %1167 = vmatpush1.msra.mxu0 0.0
  %1168 = vmatprep.subr.mxu0 0.0
  %1169 = vmatpush1.msra.mxu0 0.0
  %1170 = vmatprep.subr.mxu0 0.0
  %1171 = vmatpush1.msra.mxu0 0.0
  %1172 = vmatprep.subr.mxu0 0.0
  %1173 = vmatpush1.msra.mxu0 0.0
  %1174 = vmatprep.subr.mxu0 0.0
  %1175 = vmatpush1.msra.mxu0 0.0
  %1176 = vmatprep.subr.mxu0 0.0
  %1177 = vmatpush1.msra.mxu0 0.0
  %1178 = vmatprep.subr.mxu0 0.0
  %1179 = vmatpush1.msra.mxu0 0.0
  %1180 = vmatprep.subr.mxu0 0.0
  %1181 = vmatpush1.msra.mxu0 0.0
  %1182 = vmatprep.subr.mxu0 0.0
  %1183 = vmatpush1.msra.mxu0 0.0
  %1184 = vmatprep.subr.mxu0 0.0
  %1185 = vmatpush1.msra.mxu0 0.0
  %1186 = vmatprep.subr.mxu0 0.0
  %1187 = vmatpush1.msra.mxu0 0.0
  %1188 = vmatprep.subr.mxu0 0.0
  %1189 = vmatpush1.msra.mxu0 0.0
  %1190 = vmatprep.subr.mxu0 0.0
  %1191 = vmatpush1.msra.mxu0 0.0
  %1192 = vmatprep.subr.mxu0 0.0
  %1193 = vmatpush1.msra.mxu0 0.0
  %1194 = vmatprep.subr.mxu0 0.0
  %1195 = vmatpush1.msra.mxu0 0.0
  %1196 = vmatprep.subr.mxu0 0.0
  %1197 = vmatpush1.msra.mxu0 0.0
  %1198 = vmatprep.subr.mxu0 0.0
  %1199 = vmatpush1.msra.mxu0 0.0
  %1200 = vmatprep.subr.mxu0 0.0
  %1201 = vmatpush1.msra.mxu0 0.0
  %1202 = vmatprep.subr.mxu0 0.0
  %1203 = vmatpush1.msra.mxu0 0.0
  %1204 = vmatprep.subr.mxu0 0.0
  %1205 = vmatpush1.msra.mxu0 0.0
  %1206 = vmatprep.subr.mxu0 0.0
  %1207 = vmatpush1.msra.mxu0 0.0
  %1208 = vmatprep.mubr.f32.mxu0 0.0
  %1209 = vmatmul.mubr.f32.gmra.mrb[0].mxu0 %v1142
  %v1210 = vpop.f32.mrb[0].mxu0
  %v1211 = vadd.f32 %v1138, %v1210
  %v1212 = vpop.f32.mrb[0].mxu0
  %1213 = vdwg.mxu0
  %vm1214 = vcmask 1024
  %1215 = vst.msk [vmem:[%s9] sm:$0x3] %vm1214, %v1211
  // Predicated region
  $region38: #{critic_forward.1} parent=0 // pred_check
    _
  $region39: #{critic_forward.1} parent=0 // pred_check_branch
    %1217 = sbr.rel (0) target = $region41
  $region40: #{critic_forward.1} parent=0 // pred_region
    _
  $region41: #{critic_forward.1} parent=0 // pred_fallthru
    _
  // Predicated region
  $region42: #{critic_forward.1} parent=0 // pred_check
    _
  $region43: #{critic_forward.1} parent=0 // pred_check_branch
    %1219 = sbr.rel (0) target = $region45
  $region44: #{critic_forward.1} parent=0 // pred_region
    _
  $region45: #{critic_forward.1} parent=0 // pred_fallthru
    _

</llo_original>
